<compile_context>
chip_gen: v5e
topology: v5e:2x2
jax: 0.10.0
libtpu: 0.0.40
codegen_flags: <defaults>
</compile_context>

<pallas_src>
import functools

import jax
import jax.numpy as jnp
from jax.experimental import pallas as pl
from jax.experimental.pallas import tpu as pltpu

INPUT_DIM = 10
LAYER_SIZES = [128, 128, 128]          # np.flip of [128,128,128] is itself
HIDDEN = 128
N_HIDDEN = len(LAYER_SIZES)
N_PASSES = N_HIDDEN + 1                # 3 stats passes + 1 output pass
BN_EPS = 1e-5
LEAKY_SLOPE = 0.01                     # PyTorch nn.LeakyReLU() default


def _round_up(x, m):
    return ((x + m - 1) // m) * m


def _label_decoder_kernel(x_ref, w0_ref, w1_ref, w2_ref, w3_ref, vec_ref, b3_ref,
                          o_ref, stats_ref, norm_ref, *,
                          batch, block_rows, mask_rows):
    """grid = (pass, row_tile).

    Pass p < 3: recompute activations up to layer p (using finalized stats of layers
    < p), compute that layer's pre-BN output and accumulate per-column sum / sum-sq
    into `stats_ref`.  Pass 3: recompute the full chain and write the 10-wide output.
    Layer p-1's (scale, shift) is finalized into `norm_ref` at the first tile of pass p.
    """
    p = pl.program_id(0)
    i = pl.program_id(1)
    inv_b = jnp.float32(1.0 / batch)

    @pl.when(jnp.logical_and(p == 0, i == 0))
    def _init():
        stats_ref[...] = jnp.zeros_like(stats_ref)

    # Finalize BN scale/shift for layer (p - 1) once, at the first row tile of pass p.
    for layer in range(N_HIDDEN):
        @pl.when(jnp.logical_and(p == layer + 1, i == 0))
        def _finalize(layer=layer):
            mu = stats_ref[layer:layer + 1, :] * inv_b
            ex2 = stats_ref[N_HIDDEN + layer:N_HIDDEN + layer + 1, :] * inv_b
            var = jnp.maximum(ex2 - mu * mu, 0.0)            # guard vs. cancellation
            gamma = vec_ref[2 * layer:2 * layer + 1, :]
            beta = vec_ref[2 * layer + 1:2 * layer + 2, :]
            scale = gamma * jax.lax.rsqrt(var + BN_EPS)      # EUP rsqrt
            norm_ref[layer:layer + 1, :] = scale
            norm_ref[N_HIDDEN + layer:N_HIDDEN + layer + 1, :] = beta - mu * scale

    x = x_ref[...]                                           # (TB, latent) f32
    w_hidden = (w0_ref, w1_ref, w2_ref)

    def chain(n_layers):
        """Recompute post-activation h after the first `n_layers` hidden layers."""
        h = x
        for l in range(n_layers):
            y = jnp.dot(h.astype(jnp.bfloat16), w_hidden[l][...],
                        preferred_element_type=jnp.float32)
            y = y * norm_ref[l:l + 1, :] + norm_ref[N_HIDDEN + l:N_HIDDEN + l + 1, :]
            h = jnp.where(y > 0, y, LEAKY_SLOPE * y)         # LeakyReLU(0.01)
        return h

    if mask_rows:
        row = jax.lax.broadcasted_iota(jnp.int32, (block_rows, 1), 0) + i * block_rows
        valid = (row < batch).astype(jnp.float32)            # (TB, 1) padded-row mask

    # Stats passes: this layer's pre-BN output; accumulate sum and sum-of-squares.
    for pp in range(N_HIDDEN):
        @pl.when(p == pp)
        def _stats(pp=pp):
            h = chain(pp)
            y = jnp.dot(h.astype(jnp.bfloat16), w_hidden[pp][...],
                        preferred_element_type=jnp.float32)  # (TB, 128) f32
            if mask_rows:
                ym = y * valid
                y2 = y * ym
            else:
                ym = y
                y2 = y * y
            stats_ref[pp:pp + 1, :] += jnp.sum(ym, axis=0, keepdims=True)
            stats_ref[N_HIDDEN + pp:N_HIDDEN + pp + 1, :] += jnp.sum(y2, axis=0,
                                                                     keepdims=True)

    # Final pass: full chain + output projection (lane width == output_dim).
    @pl.when(p == N_HIDDEN)
    def _final():
        h = chain(N_HIDDEN)
        o_ref[...] = (jnp.dot(h.astype(jnp.bfloat16), w3_ref[...],
                              preferred_element_type=jnp.float32)
                      + b3_ref[...])


def pack_params(params):
    """PyTorch-layout list [w0,b0,g0,t0, w1,b1,g1,t1, w2,b2,g2,t2, w3,b3] ->
    kernel operands.  Hidden-layer linear biases are dropped (exact under
    training-mode BN mean subtraction).  Weights stored bf16 for the MXU."""
    w0, _, g0, t0 = params[0:4]
    w1, _, g1, t1 = params[4:8]
    w2, _, g2, t2 = params[8:12]
    w3, b3 = params[12:14]
    vec = jnp.concatenate([g0, t0, g1, t1, g2, t2], axis=0).astype(jnp.float32)  # (6,128)
    return (w0.astype(jnp.bfloat16), w1.astype(jnp.bfloat16),
            w2.astype(jnp.bfloat16), w3.astype(jnp.bfloat16),
            vec, b3.astype(jnp.float32))


def label_decoder_forward(x, packed, *, block_rows=512):
    """x: (B, latent_dim) -> (B, INPUT_DIM) f32, training-mode BatchNorm semantics.
    block_rows: batch tile (>=512 good for v6e; 256-512 for v7x's 64 MiB VMEM)."""
    w0, w1, w2, w3, vec, b3 = packed
    B, latent = x.shape
    out_dim = w3.shape[1]
    x32 = x.astype(jnp.float32)

    tb = min(_round_up(block_rows, 8), _round_up(B, 8))
    b_pad = _round_up(B, tb)
    if b_pad != B:
        x32 = jnp.pad(x32, ((0, b_pad - B), (0, 0)))
    n_tiles = b_pad // tb

    kernel = functools.partial(_label_decoder_kernel,
                               batch=B, block_rows=tb, mask_rows=(b_pad != B))
    const = lambda p, i: (0, 0)                              # VMEM-resident operands

    grid_spec = pltpu.PrefetchScalarGridSpec(
        num_scalar_prefetch=0,
        grid=(N_PASSES, n_tiles),
        in_specs=[
            pl.BlockSpec((tb, latent), lambda p, i: (i, 0)),     # x row tiles
            pl.BlockSpec((latent, HIDDEN), const),               # w0 (bf16)
            pl.BlockSpec((HIDDEN, HIDDEN), const),               # w1 (bf16)
            pl.BlockSpec((HIDDEN, HIDDEN), const),               # w2 (bf16)
            pl.BlockSpec((HIDDEN, out_dim), const),              # w3 (bf16)
            pl.BlockSpec((2 * N_HIDDEN, HIDDEN), const),         # gammas / betas (f32)
            pl.BlockSpec((1, out_dim), const),                   # final bias (f32)
        ],
        out_specs=pl.BlockSpec((tb, out_dim), lambda p, i: (i, 0)),
        scratch_shapes=[
            pltpu.VMEM((2 * N_HIDDEN, HIDDEN), jnp.float32),     # sum / sum-sq
            pltpu.VMEM((2 * N_HIDDEN, HIDDEN), jnp.float32),     # scale / shift
        ],
    )
    out = pl.pallas_call(
        kernel,
        grid_spec=grid_spec,
        out_shape=jax.ShapeDtypeStruct((b_pad, out_dim), jnp.float32),
        compiler_params=pltpu.CompilerParams(
            # TODO(synk): row-tile axis -> "parallel" for v7x megacore once BN partial
            # sums are reduced across cores.
            dimension_semantics=("arbitrary", "arbitrary"),
            vmem_limit_bytes=32 * 1024 * 1024),
    )(x32, w0, w1, w2, w3, vec, b3)
    return out[:B] if b_pad != B else out


def init_params(key, latent_dim, layer_sizes=LAYER_SIZES, output_dim=INPUT_DIM):
    """Deterministic synthetic init mirroring nn.Linear / nn.BatchNorm1d shapes
    (gamma/beta randomized so the affine BN path is actually exercised)."""
    params = []
    pre = latent_dim
    dims = list(layer_sizes) + [output_dim]
    for i, pos in enumerate(dims):
        key, kw, kb, kg, kt = jax.random.split(key, 5)
        bound = 1.0 / jnp.sqrt(jnp.float32(pre))
        w = jax.random.uniform(kw, (pre, pos), jnp.float32, -bound, bound)  # (in, out)
        b = jax.random.uniform(kb, (1, pos), jnp.float32, -bound, bound)
        params.extend([w, b])
        if i < len(layer_sizes):
            gamma = jax.random.uniform(kg, (1, pos), jnp.float32, 0.5, 1.5)
            beta = jax.random.uniform(kt, (1, pos), jnp.float32, -0.5, 0.5)
            params.extend([gamma, beta])
        pre = pos
    return params


def reference_forward(x, params):
    """Pure-f32 reference of the PyTorch training-mode forward (biases included)."""
    h = x.astype(jnp.float32)
    idx = 0
    for _ in range(N_HIDDEN):
        w, b, g, t = params[idx], params[idx + 1], params[idx + 2], params[idx + 3]
        idx += 4
        y = h @ w + b
        mu = jnp.mean(y, axis=0, keepdims=True)
        var = jnp.mean((y - mu) ** 2, axis=0, keepdims=True)
        y = (y - mu) / jnp.sqrt(var + BN_EPS) * g + t
        h = jnp.where(y > 0, y, LEAKY_SLOPE * y)
    w, b = params[idx], params[idx + 1]
    return h @ w + b


def mixed_reference_forward(x, params):
    """JAX reference reproducing the kernel's arithmetic (bf16 matmul operands,
    f32 accumulation, bias-free hidden layers, E[y^2]-mu^2 batch stats)."""
    h = x.astype(jnp.float32)
    idx = 0
    for _ in range(N_HIDDEN):
        w, _, g, t = params[idx], params[idx + 1], params[idx + 2], params[idx + 3]
        idx += 4
        y = jnp.dot(h.astype(jnp.bfloat16), w.astype(jnp.bfloat16),
                    preferred_element_type=jnp.float32)
        mu = jnp.mean(y, axis=0, keepdims=True)
        var = jnp.maximum(jnp.mean(y * y, axis=0, keepdims=True) - mu * mu, 0.0)
        scale = g * jax.lax.rsqrt(var + BN_EPS)
        y = y * scale + (t - mu * scale)
        h = jnp.where(y > 0, y, LEAKY_SLOPE * y)
    w, b = params[idx], params[idx + 1]
    return jnp.dot(h.astype(jnp.bfloat16), w.astype(jnp.bfloat16),
                   preferred_element_type=jnp.float32) + b


if __name__ == "__main__":
    key = jax.random.PRNGKey(0)
    k_x1, k_x2, k_p = jax.random.split(key, 3)

    latent_dim = 16
    params = init_params(k_p, latent_dim)
    packed = pack_params(params)

    # Case 1: batch is a multiple of 8 (no padded rows).
    x1 = jax.random.normal(k_x1, (8, latent_dim), dtype=jnp.float32)
    out1 = jax.block_until_ready(label_decoder_forward(x1, packed))
    assert out1.shape == (8, INPUT_DIM)
    mref1 = mixed_reference_forward(x1, params)
    fref1 = reference_forward(x1, params)
    assert jnp.allclose(out1, mref1, atol=1e-2, rtol=1e-2), \
        float(jnp.max(jnp.abs(out1 - mref1)))
    assert jnp.allclose(out1, fref1, atol=1e-1, rtol=1e-1), \
        float(jnp.max(jnp.abs(out1 - fref1)))

    # Case 2: ragged batch (exercises padded-row masking of the BN statistics).
    x2 = jax.random.normal(k_x2, (6, latent_dim), dtype=jnp.float32)
    out2 = jax.block_until_ready(label_decoder_forward(x2, packed))
    assert out2.shape == (6, INPUT_DIM)
    mref2 = mixed_reference_forward(x2, params)
    fref2 = reference_forward(x2, params)
    assert jnp.allclose(out2, mref2, atol=1e-2, rtol=1e-2), \
        float(jnp.max(jnp.abs(out2 - mref2)))
    assert jnp.allclose(out2, fref2, atol=1e-1, rtol=1e-1), \
        float(jnp.max(jnp.abs(out2 - fref2)))

    print("KERNEL_OK")
</pallas_src>

<mosaic_0001>
module attributes {stable_mosaic.version = 11 : i64} {
  func.func @_label_decoder_kernel(%arg0: i32, %arg1: i32, %arg2: memref<8x16xf32, #tpu.memory_space<vmem>>, %arg3: memref<16x128xbf16, #tpu.memory_space<vmem>>, %arg4: memref<128x128xbf16, #tpu.memory_space<vmem>>, %arg5: memref<128x128xbf16, #tpu.memory_space<vmem>>, %arg6: memref<128x10xbf16, #tpu.memory_space<vmem>>, %arg7: memref<6x128xf32, #tpu.memory_space<vmem>>, %arg8: memref<1x10xf32, #tpu.memory_space<vmem>>, %arg9: memref<8x10xf32, #tpu.memory_space<vmem>>, %arg10: memref<6x128xf32, #tpu.memory_space<vmem>>, %arg11: memref<6x128xf32, #tpu.memory_space<vmem>>) attributes {dimension_semantics = [#tpu.dimension_semantics<arbitrary>, #tpu.dimension_semantics<arbitrary>], iteration_bounds = array<i64: 4, 1>, scalar_prefetch = 0 : i64, scratch_operands = 2 : i64, tpu.core_type = #tpu.core_type<tc>, window_params = [{transform_indices = @transform_0, window_bounds = array<i64: 8, 16>}, {pipeline_mode = #tpu.pipeline_mode<synchronous>, transform_indices = @transform_1, window_bounds = array<i64: 16, 128>}, {pipeline_mode = #tpu.pipeline_mode<synchronous>, transform_indices = @transform_2, window_bounds = array<i64: 128, 128>}, {pipeline_mode = #tpu.pipeline_mode<synchronous>, transform_indices = @transform_3, window_bounds = array<i64: 128, 128>}, {pipeline_mode = #tpu.pipeline_mode<synchronous>, transform_indices = @transform_4, window_bounds = array<i64: 128, 10>}, {pipeline_mode = #tpu.pipeline_mode<synchronous>, transform_indices = @transform_5, window_bounds = array<i64: 6, 128>}, {pipeline_mode = #tpu.pipeline_mode<synchronous>, transform_indices = @transform_6, window_bounds = array<i64: 1, 10>}, {transform_indices = @transform_7, window_bounds = array<i64: 8, 10>}]} {
    %c0_i32 = arith.constant 0 : i32
    %0 = arith.cmpi eq, %arg0, %c0_i32 : i32
    %c0_i32_0 = arith.constant 0 : i32
    %1 = arith.cmpi eq, %arg1, %c0_i32_0 : i32
    %2 = arith.andi %0, %1 : i1
    %3 = arith.extui %2 : i1 to i32
    %c0_i32_1 = arith.constant 0 : i32
    %4 = arith.cmpi ne, %3, %c0_i32_1 : i32
    scf.if %4 {
      %cst_19 = arith.constant 0.000000e+00 : f32
      %33 = vector.broadcast %cst_19 : f32 to vector<6x128xf32>
      %c0_20 = arith.constant 0 : index
      %c0_21 = arith.constant 0 : index
      %34 = vector.load %arg10[%c0_20, %c0_21] : memref<6x128xf32, #tpu.memory_space<vmem>>, vector<6x128xf32>
      tpu.vector_store %arg10[%c0_20, %c0_21], %33 {strides = array<i32>} : memref<6x128xf32, #tpu.memory_space<vmem>>, vector<6x128xf32>,
    } else {
    }
    %c1_i32 = arith.constant 1 : i32
    %5 = arith.cmpi eq, %arg0, %c1_i32 : i32
    %c0_i32_2 = arith.constant 0 : i32
    %6 = arith.cmpi eq, %arg1, %c0_i32_2 : i32
    %7 = arith.andi %5, %6 : i1
    %8 = arith.extui %7 : i1 to i32
    %cst = arith.constant 1.250000e-01 : f32
    %c0_i32_3 = arith.constant 0 : i32
    %9 = arith.cmpi ne, %8, %c0_i32_3 : i32
    scf.if %9 {
      %c0_19 = arith.constant 0 : index
      %c0_20 = arith.constant 0 : index
      %33 = vector.load %arg10[%c0_19, %c0_20] : memref<6x128xf32, #tpu.memory_space<vmem>>, vector<1x128xf32>
      %34 = vector.broadcast %cst : f32 to vector<1x128xf32>
      %35 = arith.mulf %33, %34 : vector<1x128xf32>
      %c3 = arith.constant 3 : index
      %c0_21 = arith.constant 0 : index
      %36 = vector.load %arg10[%c3, %c0_21] : memref<6x128xf32, #tpu.memory_space<vmem>>, vector<1x128xf32>
      %37 = vector.broadcast %cst : f32 to vector<1x128xf32>
      %38 = arith.mulf %36, %37 : vector<1x128xf32>
      %39 = arith.mulf %35, %35 : vector<1x128xf32>
      %40 = arith.subf %38, %39 : vector<1x128xf32>
      %cst_22 = arith.constant 0.000000e+00 : f32
      %41 = vector.broadcast %cst_22 : f32 to vector<1x128xf32>
      %42 = arith.maximumf %40, %41 : vector<1x128xf32>
      %c0_23 = arith.constant 0 : index
      %c0_24 = arith.constant 0 : index
      %43 = vector.load %arg7[%c0_23, %c0_24] : memref<6x128xf32, #tpu.memory_space<vmem>>, vector<1x128xf32>
      %c1 = arith.constant 1 : index
      %c0_25 = arith.constant 0 : index
      %44 = vector.load %arg7[%c1, %c0_25] : memref<6x128xf32, #tpu.memory_space<vmem>>, vector<1x128xf32>
      %cst_26 = arith.constant 9.99999974E-6 : f32
      %45 = vector.broadcast %cst_26 : f32 to vector<1x128xf32>
      %46 = arith.addf %42, %45 : vector<1x128xf32>
      %47 = math.rsqrt %46 : vector<1x128xf32>
      %48 = arith.mulf %43, %47 : vector<1x128xf32>
      %c0_27 = arith.constant 0 : index
      %c0_28 = arith.constant 0 : index
      %49 = vector.load %arg11[%c0_27, %c0_28] : memref<6x128xf32, #tpu.memory_space<vmem>>, vector<1x128xf32>
      tpu.vector_store %arg11[%c0_27, %c0_28], %48 {strides = array<i32>} : memref<6x128xf32, #tpu.memory_space<vmem>>, vector<1x128xf32>,
      %50 = arith.mulf %35, %48 : vector<1x128xf32>
      %51 = arith.subf %44, %50 : vector<1x128xf32>
      %c3_29 = arith.constant 3 : index
      %c0_30 = arith.constant 0 : index
      %52 = vector.load %arg11[%c3_29, %c0_30] : memref<6x128xf32, #tpu.memory_space<vmem>>, vector<1x128xf32>
      tpu.vector_store %arg11[%c3_29, %c0_30], %51 {strides = array<i32>} : memref<6x128xf32, #tpu.memory_space<vmem>>, vector<1x128xf32>,
    } else {
    }
    %c2_i32 = arith.constant 2 : i32
    %10 = arith.cmpi eq, %arg0, %c2_i32 : i32
    %c0_i32_4 = arith.constant 0 : i32
    %11 = arith.cmpi eq, %arg1, %c0_i32_4 : i32
    %12 = arith.andi %10, %11 : i1
    %13 = arith.extui %12 : i1 to i32
    %cst_5 = arith.constant 1.250000e-01 : f32
    %c0_i32_6 = arith.constant 0 : i32
    %14 = arith.cmpi ne, %13, %c0_i32_6 : i32
    scf.if %14 {
      %c1 = arith.constant 1 : index
      %c0_19 = arith.constant 0 : index
      %33 = vector.load %arg10[%c1, %c0_19] : memref<6x128xf32, #tpu.memory_space<vmem>>, vector<1x128xf32>
      %34 = vector.broadcast %cst_5 : f32 to vector<1x128xf32>
      %35 = arith.mulf %33, %34 : vector<1x128xf32>
      %c4 = arith.constant 4 : index
      %c0_20 = arith.constant 0 : index
      %36 = vector.load %arg10[%c4, %c0_20] : memref<6x128xf32, #tpu.memory_space<vmem>>, vector<1x128xf32>
      %37 = vector.broadcast %cst_5 : f32 to vector<1x128xf32>
      %38 = arith.mulf %36, %37 : vector<1x128xf32>
      %39 = arith.mulf %35, %35 : vector<1x128xf32>
      %40 = arith.subf %38, %39 : vector<1x128xf32>
      %cst_21 = arith.constant 0.000000e+00 : f32
      %41 = vector.broadcast %cst_21 : f32 to vector<1x128xf32>
      %42 = arith.maximumf %40, %41 : vector<1x128xf32>
      %c2 = arith.constant 2 : index
      %c0_22 = arith.constant 0 : index
      %43 = vector.load %arg7[%c2, %c0_22] : memref<6x128xf32, #tpu.memory_space<vmem>>, vector<1x128xf32>
      %c3 = arith.constant 3 : index
      %c0_23 = arith.constant 0 : index
      %44 = vector.load %arg7[%c3, %c0_23] : memref<6x128xf32, #tpu.memory_space<vmem>>, vector<1x128xf32>
      %cst_24 = arith.constant 9.99999974E-6 : f32
      %45 = vector.broadcast %cst_24 : f32 to vector<1x128xf32>
      %46 = arith.addf %42, %45 : vector<1x128xf32>
      %47 = math.rsqrt %46 : vector<1x128xf32>
      %48 = arith.mulf %43, %47 : vector<1x128xf32>
      %c1_25 = arith.constant 1 : index
      %c0_26 = arith.constant 0 : index
      %49 = vector.load %arg11[%c1_25, %c0_26] : memref<6x128xf32, #tpu.memory_space<vmem>>, vector<1x128xf32>
      tpu.vector_store %arg11[%c1_25, %c0_26], %48 {strides = array<i32>} : memref<6x128xf32, #tpu.memory_space<vmem>>, vector<1x128xf32>,
      %50 = arith.mulf %35, %48 : vector<1x128xf32>
      %51 = arith.subf %44, %50 : vector<1x128xf32>
      %c4_27 = arith.constant 4 : index
      %c0_28 = arith.constant 0 : index
      %52 = vector.load %arg11[%c4_27, %c0_28] : memref<6x128xf32, #tpu.memory_space<vmem>>, vector<1x128xf32>
      tpu.vector_store %arg11[%c4_27, %c0_28], %51 {strides = array<i32>} : memref<6x128xf32, #tpu.memory_space<vmem>>, vector<1x128xf32>,
    } else {
    }
    %c3_i32 = arith.constant 3 : i32
    %15 = arith.cmpi eq, %arg0, %c3_i32 : i32
    %c0_i32_7 = arith.constant 0 : i32
    %16 = arith.cmpi eq, %arg1, %c0_i32_7 : i32
    %17 = arith.andi %15, %16 : i1
    %18 = arith.extui %17 : i1 to i32
    %cst_8 = arith.constant 1.250000e-01 : f32
    %c0_i32_9 = arith.constant 0 : i32
    %19 = arith.cmpi ne, %18, %c0_i32_9 : i32
    scf.if %19 {
      %c2 = arith.constant 2 : index
      %c0_19 = arith.constant 0 : index
      %33 = vector.load %arg10[%c2, %c0_19] : memref<6x128xf32, #tpu.memory_space<vmem>>, vector<1x128xf32>
      %34 = vector.broadcast %cst_8 : f32 to vector<1x128xf32>
      %35 = arith.mulf %33, %34 : vector<1x128xf32>
      %c5 = arith.constant 5 : index
      %c0_20 = arith.constant 0 : index
      %36 = vector.load %arg10[%c5, %c0_20] : memref<6x128xf32, #tpu.memory_space<vmem>>, vector<1x128xf32>
      %37 = vector.broadcast %cst_8 : f32 to vector<1x128xf32>
      %38 = arith.mulf %36, %37 : vector<1x128xf32>
      %39 = arith.mulf %35, %35 : vector<1x128xf32>
      %40 = arith.subf %38, %39 : vector<1x128xf32>
      %cst_21 = arith.constant 0.000000e+00 : f32
      %41 = vector.broadcast %cst_21 : f32 to vector<1x128xf32>
      %42 = arith.maximumf %40, %41 : vector<1x128xf32>
      %c4 = arith.constant 4 : index
      %c0_22 = arith.constant 0 : index
      %43 = vector.load %arg7[%c4, %c0_22] : memref<6x128xf32, #tpu.memory_space<vmem>>, vector<1x128xf32>
      %c5_23 = arith.constant 5 : index
      %c0_24 = arith.constant 0 : index
      %44 = vector.load %arg7[%c5_23, %c0_24] : memref<6x128xf32, #tpu.memory_space<vmem>>, vector<1x128xf32>
      %cst_25 = arith.constant 9.99999974E-6 : f32
      %45 = vector.broadcast %cst_25 : f32 to vector<1x128xf32>
      %46 = arith.addf %42, %45 : vector<1x128xf32>
      %47 = math.rsqrt %46 : vector<1x128xf32>
      %48 = arith.mulf %43, %47 : vector<1x128xf32>
      %c2_26 = arith.constant 2 : index
      %c0_27 = arith.constant 0 : index
      %49 = vector.load %arg11[%c2_26, %c0_27] : memref<6x128xf32, #tpu.memory_space<vmem>>, vector<1x128xf32>
      tpu.vector_store %arg11[%c2_26, %c0_27], %48 {strides = array<i32>} : memref<6x128xf32, #tpu.memory_space<vmem>>, vector<1x128xf32>,
      %50 = arith.mulf %35, %48 : vector<1x128xf32>
      %51 = arith.subf %44, %50 : vector<1x128xf32>
      %c5_28 = arith.constant 5 : index
      %c0_29 = arith.constant 0 : index
      %52 = vector.load %arg11[%c5_28, %c0_29] : memref<6x128xf32, #tpu.memory_space<vmem>>, vector<1x128xf32>
      tpu.vector_store %arg11[%c5_28, %c0_29], %51 {strides = array<i32>} : memref<6x128xf32, #tpu.memory_space<vmem>>, vector<1x128xf32>,
    } else {
    }
    %c0 = arith.constant 0 : index
    %c0_10 = arith.constant 0 : index
    %20 = vector.load %arg2[%c0, %c0_10] : memref<8x16xf32, #tpu.memory_space<vmem>>, vector<8x16xf32>
    %c0_i32_11 = arith.constant 0 : i32
    %21 = arith.cmpi eq, %arg0, %c0_i32_11 : i32
    %22 = arith.extui %21 : i1 to i32
    %c0_i32_12 = arith.constant 0 : i32
    %23 = arith.cmpi ne, %22, %c0_i32_12 : i32
    scf.if %23 {
      %33 = arith.truncf %20 : vector<8x16xf32> to vector<8x16xbf16>
      %c0_19 = arith.constant 0 : index
      %c0_20 = arith.constant 0 : index
      %34 = vector.load %arg3[%c0_19, %c0_20] : memref<16x128xbf16, #tpu.memory_space<vmem>>, vector<16x128xbf16>
      %cst_21 = arith.constant dense<0.000000e+00> : vector<8x128xf32>
      %35 = tpu.matmul %33, %34, %cst_21 {dimension_numbers = #tpu.dot_dimension_numbers<[1], [0], [0], [1], [0, 0, 1, 1], [], []>} : vector<8x16xbf16>, vector<16x128xbf16>, vector<8x128xf32> -> vector<8x128xf32>
      %36 = arith.mulf %35, %35 : vector<8x128xf32>
      %c0_22 = arith.constant 0 : index
      %c0_23 = arith.constant 0 : index
      %37 = vector.load %arg10[%c0_22, %c0_23] : memref<6x128xf32, #tpu.memory_space<vmem>>, vector<1x128xf32>
      %cst_24 = arith.constant dense<0.000000e+00> : vector<128xf32>
      %38 = vector.multi_reduction <add>, %35, %cst_24 [0] : vector<8x128xf32> to vector<128xf32>
      %39 = vector.shape_cast %38 : vector<128xf32> to vector<1x128xf32>
      %40 = arith.addf %37, %39 : vector<1x128xf32>
      %c0_25 = arith.constant 0 : index
      %c0_26 = arith.constant 0 : index
      %41 = vector.load %arg10[%c0_25, %c0_26] : memref<6x128xf32, #tpu.memory_space<vmem>>, vector<1x128xf32>
      tpu.vector_store %arg10[%c0_25, %c0_26], %40 {strides = array<i32>} : memref<6x128xf32, #tpu.memory_space<vmem>>, vector<1x128xf32>,
      %c3 = arith.constant 3 : index
      %c0_27 = arith.constant 0 : index
      %42 = vector.load %arg10[%c3, %c0_27] : memref<6x128xf32, #tpu.memory_space<vmem>>, vector<1x128xf32>
      %cst_28 = arith.constant dense<0.000000e+00> : vector<128xf32>
      %43 = vector.multi_reduction <add>, %36, %cst_28 [0] : vector<8x128xf32> to vector<128xf32>
      %44 = vector.shape_cast %43 : vector<128xf32> to vector<1x128xf32>
      %45 = arith.addf %42, %44 : vector<1x128xf32>
      %c3_29 = arith.constant 3 : index
      %c0_30 = arith.constant 0 : index
      %46 = vector.load %arg10[%c3_29, %c0_30] : memref<6x128xf32, #tpu.memory_space<vmem>>, vector<1x128xf32>
      tpu.vector_store %arg10[%c3_29, %c0_30], %45 {strides = array<i32>} : memref<6x128xf32, #tpu.memory_space<vmem>>, vector<1x128xf32>,
    } else {
    }
    %c1_i32_13 = arith.constant 1 : i32
    %24 = arith.cmpi eq, %arg0, %c1_i32_13 : i32
    %25 = arith.extui %24 : i1 to i32
    %c0_i32_14 = arith.constant 0 : i32
    %26 = arith.cmpi ne, %25, %c0_i32_14 : i32
    scf.if %26 {
      %33 = arith.truncf %20 : vector<8x16xf32> to vector<8x16xbf16>
      %c0_19 = arith.constant 0 : index
      %c0_20 = arith.constant 0 : index
      %34 = vector.load %arg3[%c0_19, %c0_20] : memref<16x128xbf16, #tpu.memory_space<vmem>>, vector<16x128xbf16>
      %cst_21 = arith.constant dense<0.000000e+00> : vector<8x128xf32>
      %35 = tpu.matmul %33, %34, %cst_21 {dimension_numbers = #tpu.dot_dimension_numbers<[1], [0], [0], [1], [0, 0, 1, 1], [], []>} : vector<8x16xbf16>, vector<16x128xbf16>, vector<8x128xf32> -> vector<8x128xf32>
      %c0_22 = arith.constant 0 : index
      %c0_23 = arith.constant 0 : index
      %36 = vector.load %arg11[%c0_22, %c0_23] : memref<6x128xf32, #tpu.memory_space<vmem>>, vector<1x128xf32>
      %37 = vector.broadcast %36 : vector<1x128xf32> to vector<8x128xf32>
      %38 = arith.mulf %35, %37 : vector<8x128xf32>
      %c3 = arith.constant 3 : index
      %c0_24 = arith.constant 0 : index
      %39 = vector.load %arg11[%c3, %c0_24] : memref<6x128xf32, #tpu.memory_space<vmem>>, vector<1x128xf32>
      %40 = vector.broadcast %39 : vector<1x128xf32> to vector<8x128xf32>
      %41 = arith.addf %38, %40 : vector<8x128xf32>
      %cst_25 = arith.constant 0.000000e+00 : f32
      %42 = vector.broadcast %cst_25 : f32 to vector<8x128xf32>
      %43 = arith.cmpf ogt, %41, %42 : vector<8x128xf32>
      %cst_26 = arith.constant 0.00999999977 : f32
      %44 = vector.broadcast %cst_26 : f32 to vector<8x128xf32>
      %45 = arith.mulf %44, %41 : vector<8x128xf32>
      %46 = arith.select %43, %41, %45 : vector<8x128xi1>, vector<8x128xf32>
      %47 = arith.truncf %46 : vector<8x128xf32> to vector<8x128xbf16>
      %c0_27 = arith.constant 0 : index
      %c0_28 = arith.constant 0 : index
      %48 = vector.load %arg4[%c0_27, %c0_28] : memref<128x128xbf16, #tpu.memory_space<vmem>>, vector<128x128xbf16>
      %cst_29 = arith.constant dense<0.000000e+00> : vector<8x128xf32>
      %49 = tpu.matmul %47, %48, %cst_29 {dimension_numbers = #tpu.dot_dimension_numbers<[1], [0], [0], [1], [0, 0, 1, 1], [], []>} : vector<8x128xbf16>, vector<128x128xbf16>, vector<8x128xf32> -> vector<8x128xf32>
      %50 = arith.mulf %49, %49 : vector<8x128xf32>
      %c1 = arith.constant 1 : index
      %c0_30 = arith.constant 0 : index
      %51 = vector.load %arg10[%c1, %c0_30] : memref<6x128xf32, #tpu.memory_space<vmem>>, vector<1x128xf32>
      %cst_31 = arith.constant dense<0.000000e+00> : vector<128xf32>
      %52 = vector.multi_reduction <add>, %49, %cst_31 [0] : vector<8x128xf32> to vector<128xf32>
      %53 = vector.shape_cast %52 : vector<128xf32> to vector<1x128xf32>
      %54 = arith.addf %51, %53 : vector<1x128xf32>
      %c1_32 = arith.constant 1 : index
      %c0_33 = arith.constant 0 : index
      %55 = vector.load %arg10[%c1_32, %c0_33] : memref<6x128xf32, #tpu.memory_space<vmem>>, vector<1x128xf32>
      tpu.vector_store %arg10[%c1_32, %c0_33], %54 {strides = array<i32>} : memref<6x128xf32, #tpu.memory_space<vmem>>, vector<1x128xf32>,
      %c4 = arith.constant 4 : index
      %c0_34 = arith.constant 0 : index
      %56 = vector.load %arg10[%c4, %c0_34] : memref<6x128xf32, #tpu.memory_space<vmem>>, vector<1x128xf32>
      %cst_35 = arith.constant dense<0.000000e+00> : vector<128xf32>
      %57 = vector.multi_reduction <add>, %50, %cst_35 [0] : vector<8x128xf32> to vector<128xf32>
      %58 = vector.shape_cast %57 : vector<128xf32> to vector<1x128xf32>
      %59 = arith.addf %56, %58 : vector<1x128xf32>
      %c4_36 = arith.constant 4 : index
      %c0_37 = arith.constant 0 : index
      %60 = vector.load %arg10[%c4_36, %c0_37] : memref<6x128xf32, #tpu.memory_space<vmem>>, vector<1x128xf32>
      tpu.vector_store %arg10[%c4_36, %c0_37], %59 {strides = array<i32>} : memref<6x128xf32, #tpu.memory_space<vmem>>, vector<1x128xf32>,
    } else {
    }
    %c2_i32_15 = arith.constant 2 : i32
    %27 = arith.cmpi eq, %arg0, %c2_i32_15 : i32
    %28 = arith.extui %27 : i1 to i32
    %c0_i32_16 = arith.constant 0 : i32
    %29 = arith.cmpi ne, %28, %c0_i32_16 : i32
    scf.if %29 {
      %33 = arith.truncf %20 : vector<8x16xf32> to vector<8x16xbf16>
      %c0_19 = arith.constant 0 : index
      %c0_20 = arith.constant 0 : index
      %34 = vector.load %arg3[%c0_19, %c0_20] : memref<16x128xbf16, #tpu.memory_space<vmem>>, vector<16x128xbf16>
      %cst_21 = arith.constant dense<0.000000e+00> : vector<8x128xf32>
      %35 = tpu.matmul %33, %34, %cst_21 {dimension_numbers = #tpu.dot_dimension_numbers<[1], [0], [0], [1], [0, 0, 1, 1], [], []>} : vector<8x16xbf16>, vector<16x128xbf16>, vector<8x128xf32> -> vector<8x128xf32>
      %c0_22 = arith.constant 0 : index
      %c0_23 = arith.constant 0 : index
      %36 = vector.load %arg11[%c0_22, %c0_23] : memref<6x128xf32, #tpu.memory_space<vmem>>, vector<1x128xf32>
      %37 = vector.broadcast %36 : vector<1x128xf32> to vector<8x128xf32>
      %38 = arith.mulf %35, %37 : vector<8x128xf32>
      %c3 = arith.constant 3 : index
      %c0_24 = arith.constant 0 : index
      %39 = vector.load %arg11[%c3, %c0_24] : memref<6x128xf32, #tpu.memory_space<vmem>>, vector<1x128xf32>
      %40 = vector.broadcast %39 : vector<1x128xf32> to vector<8x128xf32>
      %41 = arith.addf %38, %40 : vector<8x128xf32>
      %cst_25 = arith.constant 0.000000e+00 : f32
      %42 = vector.broadcast %cst_25 : f32 to vector<8x128xf32>
      %43 = arith.cmpf ogt, %41, %42 : vector<8x128xf32>
      %cst_26 = arith.constant 0.00999999977 : f32
      %44 = vector.broadcast %cst_26 : f32 to vector<8x128xf32>
      %45 = arith.mulf %44, %41 : vector<8x128xf32>
      %46 = arith.select %43, %41, %45 : vector<8x128xi1>, vector<8x128xf32>
      %47 = arith.truncf %46 : vector<8x128xf32> to vector<8x128xbf16>
      %c0_27 = arith.constant 0 : index
      %c0_28 = arith.constant 0 : index
      %48 = vector.load %arg4[%c0_27, %c0_28] : memref<128x128xbf16, #tpu.memory_space<vmem>>, vector<128x128xbf16>
      %cst_29 = arith.constant dense<0.000000e+00> : vector<8x128xf32>
      %49 = tpu.matmul %47, %48, %cst_29 {dimension_numbers = #tpu.dot_dimension_numbers<[1], [0], [0], [1], [0, 0, 1, 1], [], []>} : vector<8x128xbf16>, vector<128x128xbf16>, vector<8x128xf32> -> vector<8x128xf32>
      %c1 = arith.constant 1 : index
      %c0_30 = arith.constant 0 : index
      %50 = vector.load %arg11[%c1, %c0_30] : memref<6x128xf32, #tpu.memory_space<vmem>>, vector<1x128xf32>
      %51 = vector.broadcast %50 : vector<1x128xf32> to vector<8x128xf32>
      %52 = arith.mulf %49, %51 : vector<8x128xf32>
      %c4 = arith.constant 4 : index
      %c0_31 = arith.constant 0 : index
      %53 = vector.load %arg11[%c4, %c0_31] : memref<6x128xf32, #tpu.memory_space<vmem>>, vector<1x128xf32>
      %54 = vector.broadcast %53 : vector<1x128xf32> to vector<8x128xf32>
      %55 = arith.addf %52, %54 : vector<8x128xf32>
      %cst_32 = arith.constant 0.000000e+00 : f32
      %56 = vector.broadcast %cst_32 : f32 to vector<8x128xf32>
      %57 = arith.cmpf ogt, %55, %56 : vector<8x128xf32>
      %cst_33 = arith.constant 0.00999999977 : f32
      %58 = vector.broadcast %cst_33 : f32 to vector<8x128xf32>
      %59 = arith.mulf %58, %55 : vector<8x128xf32>
      %60 = arith.select %57, %55, %59 : vector<8x128xi1>, vector<8x128xf32>
      %61 = arith.truncf %60 : vector<8x128xf32> to vector<8x128xbf16>
      %c0_34 = arith.constant 0 : index
      %c0_35 = arith.constant 0 : index
      %62 = vector.load %arg5[%c0_34, %c0_35] : memref<128x128xbf16, #tpu.memory_space<vmem>>, vector<128x128xbf16>
      %cst_36 = arith.constant dense<0.000000e+00> : vector<8x128xf32>
      %63 = tpu.matmul %61, %62, %cst_36 {dimension_numbers = #tpu.dot_dimension_numbers<[1], [0], [0], [1], [0, 0, 1, 1], [], []>} : vector<8x128xbf16>, vector<128x128xbf16>, vector<8x128xf32> -> vector<8x128xf32>
      %64 = arith.mulf %63, %63 : vector<8x128xf32>
      %c2 = arith.constant 2 : index
      %c0_37 = arith.constant 0 : index
      %65 = vector.load %arg10[%c2, %c0_37] : memref<6x128xf32, #tpu.memory_space<vmem>>, vector<1x128xf32>
      %cst_38 = arith.constant dense<0.000000e+00> : vector<128xf32>
      %66 = vector.multi_reduction <add>, %63, %cst_38 [0] : vector<8x128xf32> to vector<128xf32>
      %67 = vector.shape_cast %66 : vector<128xf32> to vector<1x128xf32>
      %68 = arith.addf %65, %67 : vector<1x128xf32>
      %c2_39 = arith.constant 2 : index
      %c0_40 = arith.constant 0 : index
      %69 = vector.load %arg10[%c2_39, %c0_40] : memref<6x128xf32, #tpu.memory_space<vmem>>, vector<1x128xf32>
      tpu.vector_store %arg10[%c2_39, %c0_40], %68 {strides = array<i32>} : memref<6x128xf32, #tpu.memory_space<vmem>>, vector<1x128xf32>,
      %c5 = arith.constant 5 : index
      %c0_41 = arith.constant 0 : index
      %70 = vector.load %arg10[%c5, %c0_41] : memref<6x128xf32, #tpu.memory_space<vmem>>, vector<1x128xf32>
      %cst_42 = arith.constant dense<0.000000e+00> : vector<128xf32>
      %71 = vector.multi_reduction <add>, %64, %cst_42 [0] : vector<8x128xf32> to vector<128xf32>
      %72 = vector.shape_cast %71 : vector<128xf32> to vector<1x128xf32>
      %73 = arith.addf %70, %72 : vector<1x128xf32>
      %c5_43 = arith.constant 5 : index
      %c0_44 = arith.constant 0 : index
      %74 = vector.load %arg10[%c5_43, %c0_44] : memref<6x128xf32, #tpu.memory_space<vmem>>, vector<1x128xf32>
      tpu.vector_store %arg10[%c5_43, %c0_44], %73 {strides = array<i32>} : memref<6x128xf32, #tpu.memory_space<vmem>>, vector<1x128xf32>,
    } else {
    }
    %c3_i32_17 = arith.constant 3 : i32
    %30 = arith.cmpi eq, %arg0, %c3_i32_17 : i32
    %31 = arith.extui %30 : i1 to i32
    %c0_i32_18 = arith.constant 0 : i32
    %32 = arith.cmpi ne, %31, %c0_i32_18 : i32
    scf.if %32 {
      %33 = arith.truncf %20 : vector<8x16xf32> to vector<8x16xbf16>
      %c0_19 = arith.constant 0 : index
      %c0_20 = arith.constant 0 : index
      %34 = vector.load %arg3[%c0_19, %c0_20] : memref<16x128xbf16, #tpu.memory_space<vmem>>, vector<16x128xbf16>
      %cst_21 = arith.constant dense<0.000000e+00> : vector<8x128xf32>
      %35 = tpu.matmul %33, %34, %cst_21 {dimension_numbers = #tpu.dot_dimension_numbers<[1], [0], [0], [1], [0, 0, 1, 1], [], []>} : vector<8x16xbf16>, vector<16x128xbf16>, vector<8x128xf32> -> vector<8x128xf32>
      %c0_22 = arith.constant 0 : index
      %c0_23 = arith.constant 0 : index
      %36 = vector.load %arg11[%c0_22, %c0_23] : memref<6x128xf32, #tpu.memory_space<vmem>>, vector<1x128xf32>
      %37 = vector.broadcast %36 : vector<1x128xf32> to vector<8x128xf32>
      %38 = arith.mulf %35, %37 : vector<8x128xf32>
      %c3 = arith.constant 3 : index
      %c0_24 = arith.constant 0 : index
      %39 = vector.load %arg11[%c3, %c0_24] : memref<6x128xf32, #tpu.memory_space<vmem>>, vector<1x128xf32>
      %40 = vector.broadcast %39 : vector<1x128xf32> to vector<8x128xf32>
      %41 = arith.addf %38, %40 : vector<8x128xf32>
      %cst_25 = arith.constant 0.000000e+00 : f32
      %42 = vector.broadcast %cst_25 : f32 to vector<8x128xf32>
      %43 = arith.cmpf ogt, %41, %42 : vector<8x128xf32>
      %cst_26 = arith.constant 0.00999999977 : f32
      %44 = vector.broadcast %cst_26 : f32 to vector<8x128xf32>
      %45 = arith.mulf %44, %41 : vector<8x128xf32>
      %46 = arith.select %43, %41, %45 : vector<8x128xi1>, vector<8x128xf32>
      %47 = arith.truncf %46 : vector<8x128xf32> to vector<8x128xbf16>
      %c0_27 = arith.constant 0 : index
      %c0_28 = arith.constant 0 : index
      %48 = vector.load %arg4[%c0_27, %c0_28] : memref<128x128xbf16, #tpu.memory_space<vmem>>, vector<128x128xbf16>
      %cst_29 = arith.constant dense<0.000000e+00> : vector<8x128xf32>
      %49 = tpu.matmul %47, %48, %cst_29 {dimension_numbers = #tpu.dot_dimension_numbers<[1], [0], [0], [1], [0, 0, 1, 1], [], []>} : vector<8x128xbf16>, vector<128x128xbf16>, vector<8x128xf32> -> vector<8x128xf32>
      %c1 = arith.constant 1 : index
      %c0_30 = arith.constant 0 : index
      %50 = vector.load %arg11[%c1, %c0_30] : memref<6x128xf32, #tpu.memory_space<vmem>>, vector<1x128xf32>
      %51 = vector.broadcast %50 : vector<1x128xf32> to vector<8x128xf32>
      %52 = arith.mulf %49, %51 : vector<8x128xf32>
      %c4 = arith.constant 4 : index
      %c0_31 = arith.constant 0 : index
      %53 = vector.load %arg11[%c4, %c0_31] : memref<6x128xf32, #tpu.memory_space<vmem>>, vector<1x128xf32>
      %54 = vector.broadcast %53 : vector<1x128xf32> to vector<8x128xf32>
      %55 = arith.addf %52, %54 : vector<8x128xf32>
      %cst_32 = arith.constant 0.000000e+00 : f32
      %56 = vector.broadcast %cst_32 : f32 to vector<8x128xf32>
      %57 = arith.cmpf ogt, %55, %56 : vector<8x128xf32>
      %cst_33 = arith.constant 0.00999999977 : f32
      %58 = vector.broadcast %cst_33 : f32 to vector<8x128xf32>
      %59 = arith.mulf %58, %55 : vector<8x128xf32>
      %60 = arith.select %57, %55, %59 : vector<8x128xi1>, vector<8x128xf32>
      %61 = arith.truncf %60 : vector<8x128xf32> to vector<8x128xbf16>
      %c0_34 = arith.constant 0 : index
      %c0_35 = arith.constant 0 : index
      %62 = vector.load %arg5[%c0_34, %c0_35] : memref<128x128xbf16, #tpu.memory_space<vmem>>, vector<128x128xbf16>
      %cst_36 = arith.constant dense<0.000000e+00> : vector<8x128xf32>
      %63 = tpu.matmul %61, %62, %cst_36 {dimension_numbers = #tpu.dot_dimension_numbers<[1], [0], [0], [1], [0, 0, 1, 1], [], []>} : vector<8x128xbf16>, vector<128x128xbf16>, vector<8x128xf32> -> vector<8x128xf32>
      %c2 = arith.constant 2 : index
      %c0_37 = arith.constant 0 : index
      %64 = vector.load %arg11[%c2, %c0_37] : memref<6x128xf32, #tpu.memory_space<vmem>>, vector<1x128xf32>
      %65 = vector.broadcast %64 : vector<1x128xf32> to vector<8x128xf32>
      %66 = arith.mulf %63, %65 : vector<8x128xf32>
      %c5 = arith.constant 5 : index
      %c0_38 = arith.constant 0 : index
      %67 = vector.load %arg11[%c5, %c0_38] : memref<6x128xf32, #tpu.memory_space<vmem>>, vector<1x128xf32>
      %68 = vector.broadcast %67 : vector<1x128xf32> to vector<8x128xf32>
      %69 = arith.addf %66, %68 : vector<8x128xf32>
      %cst_39 = arith.constant 0.000000e+00 : f32
      %70 = vector.broadcast %cst_39 : f32 to vector<8x128xf32>
      %71 = arith.cmpf ogt, %69, %70 : vector<8x128xf32>
      %cst_40 = arith.constant 0.00999999977 : f32
      %72 = vector.broadcast %cst_40 : f32 to vector<8x128xf32>
      %73 = arith.mulf %72, %69 : vector<8x128xf32>
      %74 = arith.select %71, %69, %73 : vector<8x128xi1>, vector<8x128xf32>
      %75 = arith.truncf %74 : vector<8x128xf32> to vector<8x128xbf16>
      %c0_41 = arith.constant 0 : index
      %c0_42 = arith.constant 0 : index
      %76 = vector.load %arg6[%c0_41, %c0_42] : memref<128x10xbf16, #tpu.memory_space<vmem>>, vector<128x10xbf16>
      %cst_43 = arith.constant dense<0.000000e+00> : vector<8x10xf32>
      %77 = tpu.matmul %75, %76, %cst_43 {dimension_numbers = #tpu.dot_dimension_numbers<[1], [0], [0], [1], [0, 0, 1, 1], [], []>} : vector<8x128xbf16>, vector<128x10xbf16>, vector<8x10xf32> -> vector<8x10xf32>
      %c0_44 = arith.constant 0 : index
      %c0_45 = arith.constant 0 : index
      %78 = vector.load %arg8[%c0_44, %c0_45] : memref<1x10xf32, #tpu.memory_space<vmem>>, vector<1x10xf32>
      %79 = vector.broadcast %78 : vector<1x10xf32> to vector<8x10xf32>
      %80 = arith.addf %77, %79 : vector<8x10xf32>
      %c0_46 = arith.constant 0 : index
      %c0_47 = arith.constant 0 : index
      %81 = vector.load %arg9[%c0_46, %c0_47] : memref<8x10xf32, #tpu.memory_space<vmem>>, vector<8x10xf32>
      tpu.vector_store %arg9[%c0_46, %c0_47], %80 {strides = array<i32>} : memref<8x10xf32, #tpu.memory_space<vmem>>, vector<8x10xf32>,
    } else {
    }
    return
  }
  func.func @transform_0(%arg0: i32, %arg1: i32) -> (i32, i32) {
    %c0_i32 = arith.constant 0 : i32
    %c0_i32_0 = arith.constant 0 : i32
    return %arg1, %c0_i32 : i32, i32
  }
  func.func @transform_1(%arg0: i32, %arg1: i32) -> (i32, i32) {
    %c0_i32 = arith.constant 0 : i32
    %c0_i32_0 = arith.constant 0 : i32
    %c0_i32_1 = arith.constant 0 : i32
    return %c0_i32, %c0_i32_0 : i32, i32
  }
  func.func @transform_2(%arg0: i32, %arg1: i32) -> (i32, i32) {
    %c0_i32 = arith.constant 0 : i32
    %c0_i32_0 = arith.constant 0 : i32
    %c0_i32_1 = arith.constant 0 : i32
    return %c0_i32, %c0_i32_0 : i32, i32
  }
  func.func @transform_3(%arg0: i32, %arg1: i32) -> (i32, i32) {
    %c0_i32 = arith.constant 0 : i32
    %c0_i32_0 = arith.constant 0 : i32
    %c0_i32_1 = arith.constant 0 : i32
    return %c0_i32, %c0_i32_0 : i32, i32
  }
  func.func @transform_4(%arg0: i32, %arg1: i32) -> (i32, i32) {
    %c0_i32 = arith.constant 0 : i32
    %c0_i32_0 = arith.constant 0 : i32
    %c0_i32_1 = arith.constant 0 : i32
    return %c0_i32, %c0_i32_0 : i32, i32
  }
  func.func @transform_5(%arg0: i32, %arg1: i32) -> (i32, i32) {
    %c0_i32 = arith.constant 0 : i32
    %c0_i32_0 = arith.constant 0 : i32
    %c0_i32_1 = arith.constant 0 : i32
    return %c0_i32, %c0_i32_0 : i32, i32
  }
  func.func @transform_6(%arg0: i32, %arg1: i32) -> (i32, i32) {
    %c0_i32 = arith.constant 0 : i32
    %c0_i32_0 = arith.constant 0 : i32
    %c0_i32_1 = arith.constant 0 : i32
    return %c0_i32, %c0_i32_0 : i32, i32
  }
  func.func @transform_7(%arg0: i32, %arg1: i32) -> (i32, i32) {
    %c0_i32 = arith.constant 0 : i32
    %c0_i32_0 = arith.constant 0 : i32
    return %arg1, %c0_i32 : i32, i32
  }
}

</mosaic_0001>

<llo_original>
// kernel: tpu_custom_call.1
$region0: #{tpu_custom_call.1}
  #allocation0 [shape = 'u32[]', space=smem, size = 0x4, offset = 0x4, fixed_abs, tag = 'smem constant byte address 0x4 - core index']
  #allocation1 [shape = 'u32[72,128]{1,0:T(1,128)}', space=vmem, size = 0x9000, scoped, tag = 'internal scratch']
  #allocation2 [shape = 'f32[6,128]{1,0:T(8,128)}', space=vmem, size = 0x1000, scoped, tag = 'scratch operand']
  #allocation3 [shape = 'f32[6,128]{1,0:T(8,128)}', space=vmem, size = 0x1000, scoped, tag = 'scratch operand']
  %s0 = inlined_call_operand.vmem [shape: f32[8,16], index: 0, kind: input, shape index: {}]
  %s1 = inlined_call_operand.hbm [shape: bf16[16,128], index: 1, kind: input, shape index: {}]
  %s2 = inlined_call_operand.vmem [shape: bf16[128,128], index: 2, kind: input, shape index: {}]
  %s3 = inlined_call_operand.hbm [shape: bf16[128,128], index: 3, kind: input, shape index: {}]
  %s4 = inlined_call_operand.vmem [shape: bf16[128,10], index: 4, kind: input, shape index: {}]
  %s5 = inlined_call_operand.hbm [shape: f32[6,128], index: 5, kind: input, shape index: {}]
  %s6 = inlined_call_operand.vmem [shape: f32[1,10], index: 6, kind: input, shape index: {}]
  %s7 = inlined_call_operand.hbm [shape: f32[8,10], index: 7, kind: output, shape index: {}]
  %s8 = sld [smem:[#allocation0]]
  $region105: #{tpu_custom_call.1} parent=0
    _
  %s10 = ssub.s32 1, %s8
  %s11 = scalar_select 0, %s10, %s8
  $region1: #{tpu_custom_call.1} parent=0
    #allocation4 [shape = 'u8[4096]{0}', space=vmem, size = 0x1000, scoped, tag = 'input window, operand 1, single buffered']
    #allocation5 [shape = 's32[2]{0}', space=sflag, size = 0x8, scoped, tag = 'scoped memory for tpu_custom_call.1']
    #allocation6 [shape = 's32[2]{0}', space=sflag, size = 0x8, scoped, tag = 'scoped memory for tpu_custom_call.1']
    #allocation7 [shape = 'u8[32768]{0}', space=vmem, size = 0x8000, scoped, tag = 'input window, operand 3, single buffered']
    #allocation8 [shape = 's32[1]{0}', space=sflag, size = 0x4, scoped, tag = 'scoped memory for tpu_custom_call.1']
    #allocation9 [shape = 'u8[4096]{0}', space=vmem, size = 0x1000, scoped, tag = 'input window, operand 5, single buffered']
    #allocation10 [shape = 'u8[4096]{0}', space=vmem, size = 0x1000, scoped, tag = 'output window, operand 0, single buffered']
    %12 = vsyncpa [#allocation5], 0
    %13 = vsyncpa [#allocation8], 0
    %14 = vsyncpa [#allocation6], 0
    loop: start=0, step=1, limit=6
    $region2: #{tpu_custom_call.1} parent=1 // loop_pre_header
      _
    $region3: #{tpu_custom_call.1} parent=1 // loop_header
      %s16 = sphi 0, %s20
      %p17 = scmp.ge.s32.totalorder %s16, 6
      %s23 = sphi 0, %s35
      %s24 = sphi 0, %s31
      %s25 = sphi 0, %s23
      %s26 = sphi 0, %s24
      %s27 = sphi 0, %s25
      %s28 = sphi 0, %s26
      %s38 = sphi 0, %s40
      %s41 = sphi 0, %s38
      %s42 = sphi 0, %s41
      %s58 = sphi 0, %s42
      %s62 = sphi 0, %s62
      %s64 = sphi 0, %s62
      %s65 = sphi 0, %s64
      %s79 = sphi 0, %s65
      %s83 = sphi 0, %s83
      %s85 = sphi 0, %s83
      %s86 = sphi 0, %s85
      %s100 = sphi 0, %s86
      %s104 = sphi 0, %s104
      %s106 = sphi 0, %s104
      %s107 = sphi 0, %s106
      %s121 = sphi 0, %s107
      %s125 = sphi 0, %s125
      %s127 = sphi 0, %s125
      %s128 = sphi 0, %s127
      %s142 = sphi 0, %s128
      %s146 = sphi 0, %s146
      %s148 = sphi 0, %s146
      %s149 = sphi 0, %s148
      %s163 = sphi 0, %s149
      %s167 = sphi 0, %s167
      %s169 = sphi 0, %s167
      %s170 = sphi 0, %s169
      %s184 = sphi 0, %s170
      %s190 = sphi 0, %s192
      %s193 = sphi 0, %s190
      %s194 = sphi 0, %s193
      %s210 = sphi 0, %s194
    $region4: #{tpu_custom_call.1} parent=1 // loop_header_branch
      %19 = sbr.rel (%p17) target = $region8
    $region5: #{tpu_custom_call.1} parent=1 // loop_body
      %s21 = ssub.s32 %s16, 1
      %s22 = ssub.s32 %s16, 2
      %s29 = sadd.s32 1, %s24
      %p30 = scmp.ge.s32.totalorder %s29, 1
      %s31 = scalar_select %p30, 0, %s29
      %s32 = sadd.s32 1, %s23
      %s33 = scalar_select %p30, %s32, %s23
      %p34 = scmp.ge.s32.totalorder %s33, 4
      %s35 = scalar_select %p34, 0, %s33
      %s36 = ssub.s32 %s24, %s31
      %p37 = scmp.eq.s32.totalorder %s36, 0
      %s39 = sadd.s32 %s38, 1
      %s40 = scalar_select %p37, %s38, %s39
      %p43 = pneg %p37
      %p44 = scmp.eq.s32.totalorder %s16, 3
      %p45 = por %p43, %p44
      %p46 = scmp.ne.s32.totalorder %s38, %s41
      %p47 = scmp.eq.s32.totalorder %s16, 0
      %p48 = por %p46, %p47
      %p49 = scmp.ne.s32.totalorder %s38, %s41
      %p50 = scmp.eq.s32.totalorder %s21, 3
      %p51 = por %p49, %p50
      %p52 = scmp.ne.s32.totalorder %s41, %s42
      %p53 = scmp.eq.s32.totalorder %s21, 0
      %p54 = por %p52, %p53
      %p55 = scmp.ne.s32.totalorder %s41, %s42
      %p56 = scmp.eq.s32.totalorder %s22, 3
      %p57 = por %p55, %p56
      %p59 = scmp.ne.s32.totalorder %s42, %s58
      %p60 = scmp.eq.s32.totalorder %s22, 0
      %p61 = por %p59, %p60
      %s63 = sadd.s32 %s62, 1
      %p66 = scmp.eq.s32.totalorder %s16, 3
      %p67 = scmp.ne.s32.totalorder %s62, %s64
      %p68 = scmp.eq.s32.totalorder %s16, 0
      %p69 = por %p67, %p68
      %p70 = scmp.ne.s32.totalorder %s62, %s64
      %p71 = scmp.eq.s32.totalorder %s21, 3
      %p72 = por %p70, %p71
      %p73 = scmp.ne.s32.totalorder %s64, %s65
      %p74 = scmp.eq.s32.totalorder %s21, 0
      %p75 = por %p73, %p74
      %p76 = scmp.ne.s32.totalorder %s64, %s65
      %p77 = scmp.eq.s32.totalorder %s22, 3
      %p78 = por %p76, %p77
      %p80 = scmp.ne.s32.totalorder %s65, %s79
      %p81 = scmp.eq.s32.totalorder %s22, 0
      %p82 = por %p80, %p81
      %s84 = sadd.s32 %s83, 1
      %p87 = scmp.eq.s32.totalorder %s16, 3
      %p88 = scmp.ne.s32.totalorder %s83, %s85
      %p89 = scmp.eq.s32.totalorder %s16, 0
      %p90 = por %p88, %p89
      %p91 = scmp.ne.s32.totalorder %s83, %s85
      %p92 = scmp.eq.s32.totalorder %s21, 3
      %p93 = por %p91, %p92
      %p94 = scmp.ne.s32.totalorder %s85, %s86
      %p95 = scmp.eq.s32.totalorder %s21, 0
      %p96 = por %p94, %p95
      %p97 = scmp.ne.s32.totalorder %s85, %s86
      %p98 = scmp.eq.s32.totalorder %s22, 3
      %p99 = por %p97, %p98
      %p101 = scmp.ne.s32.totalorder %s86, %s100
      %p102 = scmp.eq.s32.totalorder %s22, 0
      %p103 = por %p101, %p102
      %s105 = sadd.s32 %s104, 1
      %p108 = scmp.eq.s32.totalorder %s16, 3
      %p109 = scmp.ne.s32.totalorder %s104, %s106
      %p110 = scmp.eq.s32.totalorder %s16, 0
      %p111 = por %p109, %p110
      %p112 = scmp.ne.s32.totalorder %s104, %s106
      %p113 = scmp.eq.s32.totalorder %s21, 3
      %p114 = por %p112, %p113
      %p115 = scmp.ne.s32.totalorder %s106, %s107
      %p116 = scmp.eq.s32.totalorder %s21, 0
      %p117 = por %p115, %p116
      %p118 = scmp.ne.s32.totalorder %s106, %s107
      %p119 = scmp.eq.s32.totalorder %s22, 3
      %p120 = por %p118, %p119
      %p122 = scmp.ne.s32.totalorder %s107, %s121
      %p123 = scmp.eq.s32.totalorder %s22, 0
      %p124 = por %p122, %p123
      %s126 = sadd.s32 %s125, 1
      %p129 = scmp.eq.s32.totalorder %s16, 3
      %p130 = scmp.ne.s32.totalorder %s125, %s127
      %p131 = scmp.eq.s32.totalorder %s16, 0
      %p132 = por %p130, %p131
      %p133 = scmp.ne.s32.totalorder %s125, %s127
      %p134 = scmp.eq.s32.totalorder %s21, 3
      %p135 = por %p133, %p134
      %p136 = scmp.ne.s32.totalorder %s127, %s128
      %p137 = scmp.eq.s32.totalorder %s21, 0
      %p138 = por %p136, %p137
      %p139 = scmp.ne.s32.totalorder %s127, %s128
      %p140 = scmp.eq.s32.totalorder %s22, 3
      %p141 = por %p139, %p140
      %p143 = scmp.ne.s32.totalorder %s128, %s142
      %p144 = scmp.eq.s32.totalorder %s22, 0
      %p145 = por %p143, %p144
      %s147 = sadd.s32 %s146, 1
      %p150 = scmp.eq.s32.totalorder %s16, 3
      %p151 = scmp.ne.s32.totalorder %s146, %s148
      %p152 = scmp.eq.s32.totalorder %s16, 0
      %p153 = por %p151, %p152
      %p154 = scmp.ne.s32.totalorder %s146, %s148
      %p155 = scmp.eq.s32.totalorder %s21, 3
      %p156 = por %p154, %p155
      %p157 = scmp.ne.s32.totalorder %s148, %s149
      %p158 = scmp.eq.s32.totalorder %s21, 0
      %p159 = por %p157, %p158
      %p160 = scmp.ne.s32.totalorder %s148, %s149
      %p161 = scmp.eq.s32.totalorder %s22, 3
      %p162 = por %p160, %p161
      %p164 = scmp.ne.s32.totalorder %s149, %s163
      %p165 = scmp.eq.s32.totalorder %s22, 0
      %p166 = por %p164, %p165
      %s168 = sadd.s32 %s167, 1
      %p171 = scmp.eq.s32.totalorder %s16, 3
      %p172 = scmp.ne.s32.totalorder %s167, %s169
      %p173 = scmp.eq.s32.totalorder %s16, 0
      %p174 = por %p172, %p173
      %p175 = scmp.ne.s32.totalorder %s167, %s169
      %p176 = scmp.eq.s32.totalorder %s21, 3
      %p177 = por %p175, %p176
      %p178 = scmp.ne.s32.totalorder %s169, %s170
      %p179 = scmp.eq.s32.totalorder %s21, 0
      %p180 = por %p178, %p179
      %p181 = scmp.ne.s32.totalorder %s169, %s170
      %p182 = scmp.eq.s32.totalorder %s22, 3
      %p183 = por %p181, %p182
      %p185 = scmp.ne.s32.totalorder %s170, %s184
      %p186 = scmp.eq.s32.totalorder %s22, 0
      %p187 = por %p185, %p186
      %s188 = ssub.s32 %s24, %s31
      %p189 = scmp.eq.s32.totalorder %s188, 0
      %s191 = sadd.s32 %s190, 1
      %s192 = scalar_select %p189, %s190, %s191
      %p195 = pneg %p189
      %p196 = scmp.eq.s32.totalorder %s16, 3
      %p197 = por %p195, %p196
      %p198 = scmp.ne.s32.totalorder %s190, %s193
      %p199 = scmp.eq.s32.totalorder %s16, 0
      %p200 = por %p198, %p199
      %p201 = scmp.ne.s32.totalorder %s190, %s193
      %p202 = scmp.eq.s32.totalorder %s21, 3
      %p203 = por %p201, %p202
      %p204 = scmp.ne.s32.totalorder %s193, %s194
      %p205 = scmp.eq.s32.totalorder %s21, 0
      %p206 = por %p204, %p205
      %p207 = scmp.ne.s32.totalorder %s193, %s194
      %p208 = scmp.eq.s32.totalorder %s22, 3
      %p209 = por %p207, %p208
      %p211 = scmp.ne.s32.totalorder %s194, %s210
      %p212 = scmp.eq.s32.totalorder %s22, 0
      %p213 = por %p211, %p212
      %p214 = scmp.le.s32.totalorder 1, %s16
      %p215 = scmp.lt.s32.totalorder %s16, 5
      %p216 = pnand %p214, %p215
      %p217 = pneg %p216
      // Predicated region
      $region9: #{tpu_custom_call.1} parent=5 // pred_check
        _
      $region10: #{tpu_custom_call.1} parent=5 // pred_check_branch
        %219 = sbr.rel (%p216) target = $region12
      $region11: #{tpu_custom_call.1} parent=5 // pred_region
        %s220 = ssub.s32 %s16, 1
        // Predicated region
        $region13: #{tpu_custom_call.1} parent=11 // pred_check
          %p221 = pneg %p54
        $region14: #{tpu_custom_call.1} parent=11 // pred_check_branch
          %223 = sbr.rel (%p221) target = $region16
        $region15: #{tpu_custom_call.1} parent=11 // pred_region
          %p224 = scmp.lt.s32.totalorder %s26, 0
          %s225 = scalar_select %p224, %s26, 0
          %s226 = smul.addr %s225, 8
          %s227 = scalar_lea.vmem %s0, %s226
        $region16: #{tpu_custom_call.1} parent=11 // pred_fallthru
          _
        // Predicated region
        $region17: #{tpu_custom_call.1} parent=11 // pred_check
          %p228 = pneg %p75
        $region18: #{tpu_custom_call.1} parent=11 // pred_check_branch
          %230 = sbr.rel (%p228) target = $region20
        $region19: #{tpu_custom_call.1} parent=11 // pred_region
          %232 = vsyncadd [#allocation5], 0
          %s233 = sshll.u32 %s1, 4
          %s234 = int_to_ptr.hbm [resolvable:$true] %s233
          %s235 = sshll.u32 [#allocation4], 4
          %s236 = int_to_ptr.vmem [resolvable:$true] %s235
          %241 = dma.hbm_to_vmem [thread:$0]  %s234, 128, %s236, [#allocation5], 64, 64, 4
        $region20: #{tpu_custom_call.1} parent=11 // pred_fallthru
          _
        // Predicated region
        $region21: #{tpu_custom_call.1} parent=11 // pred_check
          %p242 = pneg %p96
        $region22: #{tpu_custom_call.1} parent=11 // pred_check_branch
          %244 = sbr.rel (%p242) target = $region24
        $region23: #{tpu_custom_call.1} parent=11 // pred_region
          _
        $region24: #{tpu_custom_call.1} parent=11 // pred_fallthru
          _
        // Predicated region
        $region25: #{tpu_custom_call.1} parent=11 // pred_check
          %p245 = pneg %p117
        $region26: #{tpu_custom_call.1} parent=11 // pred_check_branch
          %247 = sbr.rel (%p245) target = $region28
        $region27: #{tpu_custom_call.1} parent=11 // pred_region
          %249 = vsyncadd [#allocation8], 0
          %s250 = sshll.u32 %s3, 4
          %s251 = int_to_ptr.hbm [resolvable:$true] %s250
          %s252 = sshll.u32 [#allocation7], 4
          %s253 = int_to_ptr.vmem [resolvable:$true] %s252
          %258 = dma.hbm_to_vmem [thread:$0]  %s251, 1024, %s253, [#allocation8], 64, 64, 4
        $region28: #{tpu_custom_call.1} parent=11 // pred_fallthru
          _
        // Predicated region
        $region29: #{tpu_custom_call.1} parent=11 // pred_check
          %p259 = pneg %p138
        $region30: #{tpu_custom_call.1} parent=11 // pred_check_branch
          %261 = sbr.rel (%p259) target = $region32
        $region31: #{tpu_custom_call.1} parent=11 // pred_region
          _
        $region32: #{tpu_custom_call.1} parent=11 // pred_fallthru
          _
        // Predicated region
        $region33: #{tpu_custom_call.1} parent=11 // pred_check
          %p262 = pneg %p159
        $region34: #{tpu_custom_call.1} parent=11 // pred_check_branch
          %264 = sbr.rel (%p262) target = $region36
        $region35: #{tpu_custom_call.1} parent=11 // pred_region
          %266 = vsyncadd [#allocation8], 0
          %s268 = sshll.u32 %s5, 4
          %s269 = int_to_ptr.hbm [resolvable:$true] %s268
          %s270 = sshll.u32 [#allocation9], 4
          %s271 = int_to_ptr.vmem [resolvable:$true] %s270
          %273 = dma.hbm_to_vmem [thread:$0]  %s269, 128, %s271, [#allocation8]
        $region36: #{tpu_custom_call.1} parent=11 // pred_fallthru
          _
        // Predicated region
        $region37: #{tpu_custom_call.1} parent=11 // pred_check
          %p274 = pneg %p180
        $region38: #{tpu_custom_call.1} parent=11 // pred_check_branch
          %276 = sbr.rel (%p274) target = $region40
        $region39: #{tpu_custom_call.1} parent=11 // pred_region
          _
        $region40: #{tpu_custom_call.1} parent=11 // pred_fallthru
          _
      $region12: #{tpu_custom_call.1} parent=5 // pred_fallthru
        _
      %p277 = scmp.lt.s32.totalorder %s16, 4
      // Predicated region
      $region41: #{tpu_custom_call.1} parent=5 // pred_check
        %p278 = pneg %p277
      $region42: #{tpu_custom_call.1} parent=5 // pred_check_branch
        %280 = sbr.rel (%p278) target = $region44
      $region43: #{tpu_custom_call.1} parent=5 // pred_region
        _
      $region44: #{tpu_custom_call.1} parent=5 // pred_fallthru
        _
      %p281 = scmp.le.s32.totalorder 1, %s16
      %p282 = scmp.lt.s32.totalorder %s16, 5
      %p283 = pnand %p281, %p282
      %p284 = pneg %p283
      // Predicated region
      $region45: #{tpu_custom_call.1} parent=5 // pred_check
        _
      $region46: #{tpu_custom_call.1} parent=5 // pred_check_branch
        %286 = sbr.rel (%p283) target = $region48
      $region47: #{tpu_custom_call.1} parent=5 // pred_region
        %s287 = ssub.s32 %s16, 1
        // Predicated region
        $region49: #{tpu_custom_call.1} parent=47 // pred_check
          %p288 = pneg %p75
        $region50: #{tpu_custom_call.1} parent=47 // pred_check_branch
          %290 = sbr.rel (%p288) target = $region52
        $region51: #{tpu_custom_call.1} parent=47 // pred_region
          %292 = dma.done [#allocation5], 128
        $region52: #{tpu_custom_call.1} parent=47 // pred_fallthru
          _
        // Predicated region
        $region53: #{tpu_custom_call.1} parent=47 // pred_check
          %p293 = pneg %p117
        $region54: #{tpu_custom_call.1} parent=47 // pred_check_branch
          %295 = sbr.rel (%p293) target = $region56
        $region55: #{tpu_custom_call.1} parent=47 // pred_region
          %297 = dma.done [#allocation8], 1024
        $region56: #{tpu_custom_call.1} parent=47 // pred_fallthru
          _
        // Predicated region
        $region57: #{tpu_custom_call.1} parent=47 // pred_check
          %p298 = pneg %p159
        $region58: #{tpu_custom_call.1} parent=47 // pred_check_branch
          %300 = sbr.rel (%p298) target = $region60
        $region59: #{tpu_custom_call.1} parent=47 // pred_region
          %302 = dma.done [#allocation8], 128
        $region60: #{tpu_custom_call.1} parent=47 // pred_fallthru
          _
        %p303 = scmp.lt.s32.totalorder %s26, 0
        %s304 = scalar_select %p303, %s26, 0
        %s305 = smul.addr %s304, 8
        %s306 = scalar_lea.vmem %s0, %s305
        %p307 = pneg %p54
        %p308 = pneg %p51
        %p309 = pneg %p75
        %p310 = pneg %p72
        %p311 = pneg %p96
        %p312 = pneg %p93
        %p313 = pneg %p117
        %p314 = pneg %p114
        %p315 = pneg %p138
        %p316 = pneg %p135
        %p317 = pneg %p159
        %p318 = pneg %p156
        %p319 = pneg %p180
        %p320 = pneg %p177
        %p321 = pneg %p206
        %p322 = pneg %p203
        %p323 = scmp.lt.s32.totalorder %s26, 0
        %s324 = scalar_select %p323, %s26, 0
        %s325 = smul.addr %s324, 8
        %s326 = scalar_lea.vmem %s0, %s325
        %p328 = scmp.eq.s32.totalorder %s25, 0
        %p329 = scmp.eq.s32.totalorder %s26, 0
        %p330 = pnand %p328, %p329
        %p331 = pneg %p330
        // Predicated region
        $region61: #{tpu_custom_call.1} parent=47 // pred_check
          _
        $region62: #{tpu_custom_call.1} parent=47 // pred_check_branch
          %333 = sbr.rel (%p330) target = $region64
        $region63: #{tpu_custom_call.1} parent=47 // pred_region
          %334 = vst [vmem:[#allocation2] sm:$0x3f] 0.0
        $region64: #{tpu_custom_call.1} parent=47 // pred_fallthru
          _
        %p335 = scmp.eq.s32.totalorder %s25, 1
        %p336 = pnand %p335, %p329
        %p337 = pneg %p336
        // Predicated region
        $region65: #{tpu_custom_call.1} parent=47 // pred_check
          _
        $region66: #{tpu_custom_call.1} parent=47 // pred_check_branch
          %339 = sbr.rel (%p336) target = $region68
        $region67: #{tpu_custom_call.1} parent=47 // pred_region
          %v340 = vld [vmem:[#allocation2] sm:$0x1]
          %v341 = vmul.f32 %v340, 0.125
          %v342 = vld [vmem:[#allocation2 + $0x3] sm:$0x1]
          %v343 = vmul.f32 %v342, 0.125
          %v344 = vmul.f32 %v341, %v341
          %v345 = vsub.f32 %v343, %v344
          %v346 = vmax.f32 %v345, 0.0
          %v347 = vld [vmem:[#allocation9] sm:$0x1]
          %v348 = vld [vmem:[#allocation9 + $0x1] sm:$0x1]
          %v349 = vadd.f32 %v346, 1e-05
          %v350 = vrsqrt.pop %v349
          %v351 = vmul.f32 %v350, %v349
          %v352 = vmul.f32 %v351, %v350
          %v353 = vmul.f32 0.5, %v352
          %v354 = vsub.f32 1.5, %v353
          %v355 = vmul.f32 %v350, %v354
          %vm356 = vweird.f32 %v349
          %vm357 = vweird.f32 %v350
          %vm358 = vmor %vm356, %vm357
          %v359 = vsel %vm358, %v350, %v355
          %v360 = vmul.f32 %v347, %v359
          %361 = vst [vmem:[#allocation3] sm:$0x1] %v360
          %v362 = vmul.f32 %v341, %v360
          %v363 = vsub.f32 %v348, %v362
          %364 = vst [vmem:[#allocation3 + $0x3] sm:$0x1] %v363
        $region68: #{tpu_custom_call.1} parent=47 // pred_fallthru
          _
        %p365 = scmp.eq.s32.totalorder %s25, 2
        %p366 = pnand %p365, %p329
        %p367 = pneg %p366
        // Predicated region
        $region69: #{tpu_custom_call.1} parent=47 // pred_check
          _
        $region70: #{tpu_custom_call.1} parent=47 // pred_check_branch
          %369 = sbr.rel (%p366) target = $region72
        $region71: #{tpu_custom_call.1} parent=47 // pred_region
          %v370 = vld [vmem:[#allocation2 + $0x1] sm:$0x1]
          %v371 = vmul.f32 %v370, 0.125
          %v372 = vld [vmem:[#allocation2 + $0x4] sm:$0x1]
          %v373 = vmul.f32 %v372, 0.125
          %v374 = vmul.f32 %v371, %v371
          %v375 = vsub.f32 %v373, %v374
          %v376 = vmax.f32 %v375, 0.0
          %v377 = vld [vmem:[#allocation9 + $0x2] sm:$0x1]
          %v378 = vld [vmem:[#allocation9 + $0x3] sm:$0x1]
          %v379 = vadd.f32 %v376, 1e-05
          %v380 = vrsqrt.pop %v379
          %v381 = vmul.f32 %v380, %v379
          %v382 = vmul.f32 %v381, %v380
          %v383 = vmul.f32 0.5, %v382
          %v384 = vsub.f32 1.5, %v383
          %v385 = vmul.f32 %v380, %v384
          %vm386 = vweird.f32 %v379
          %vm387 = vweird.f32 %v380
          %vm388 = vmor %vm386, %vm387
          %v389 = vsel %vm388, %v380, %v385
          %v390 = vmul.f32 %v377, %v389
          %391 = vst [vmem:[#allocation3 + $0x1] sm:$0x1] %v390
          %v392 = vmul.f32 %v371, %v390
          %v393 = vsub.f32 %v378, %v392
          %394 = vst [vmem:[#allocation3 + $0x4] sm:$0x1] %v393
        $region72: #{tpu_custom_call.1} parent=47 // pred_fallthru
          _
        %p395 = scmp.eq.s32.totalorder %s25, 3
        %p396 = pnand %p395, %p329
        %p397 = pneg %p396
        // Predicated region
        $region73: #{tpu_custom_call.1} parent=47 // pred_check
          _
        $region74: #{tpu_custom_call.1} parent=47 // pred_check_branch
          %399 = sbr.rel (%p396) target = $region76
        $region75: #{tpu_custom_call.1} parent=47 // pred_region
          %v400 = vld [vmem:[#allocation2 + $0x2] sm:$0x1]
          %v401 = vmul.f32 %v400, 0.125
          %v402 = vld [vmem:[#allocation2 + $0x5] sm:$0x1]
          %v403 = vmul.f32 %v402, 0.125
          %v404 = vmul.f32 %v401, %v401
          %v405 = vsub.f32 %v403, %v404
          %v406 = vmax.f32 %v405, 0.0
          %v407 = vld [vmem:[#allocation9 + $0x4] sm:$0x1]
          %v408 = vld [vmem:[#allocation9 + $0x5] sm:$0x1]
          %v409 = vadd.f32 %v406, 1e-05
          %v410 = vrsqrt.pop %v409
          %v411 = vmul.f32 %v410, %v409
          %v412 = vmul.f32 %v411, %v410
          %v413 = vmul.f32 0.5, %v412
          %v414 = vsub.f32 1.5, %v413
          %v415 = vmul.f32 %v410, %v414
          %vm416 = vweird.f32 %v409
          %vm417 = vweird.f32 %v410
          %vm418 = vmor %vm416, %vm417
          %v419 = vsel %vm418, %v410, %v415
          %v420 = vmul.f32 %v407, %v419
          %421 = vst [vmem:[#allocation3 + $0x2] sm:$0x1] %v420
          %v422 = vmul.f32 %v401, %v420
          %v423 = vsub.f32 %v408, %v422
          %424 = vst [vmem:[#allocation3 + $0x5] sm:$0x1] %v423
        $region76: #{tpu_custom_call.1} parent=47 // pred_fallthru
          _
        %v425 = vld [vmem:[%s326] sm:$0xff]
        // Predicated region
        $region77: #{tpu_custom_call.1} parent=47 // pred_check
          %p426 = pneg %p328
        $region78: #{tpu_custom_call.1} parent=47 // pred_check_branch
          %428 = sbr.rel (%p426) target = $region80
        $region79: #{tpu_custom_call.1} parent=47 // pred_region
          %v429 = vpack.c.bf16 %v425, %v425
          %v430 = vld [vmem:[#allocation4] sm:$0xf]
          %v431 = vld [vmem:[#allocation4 + $0x4] sm:$0xf]
          %v434 = vunpack.c.l.b16 %v430
          %v435 = vunpack.c.l.b16 %v431
          %v436 = vpack.c.b16 %v435, %v434
          %vm438 = vcmask 130048
          %v440 = vsel %vm438, %v429, 0
          %442 = vmatpush.bf16.msra.mxu0 0
          %443 = vmatpush.bf16.msra.mxu0 0
          %444 = vmatpush.bf16.msra.mxu0 0
          %445 = vmatpush.bf16.msra.mxu0 0
          %446 = vmatpush.bf16.msra.mxu0 0
          %447 = vmatpush.bf16.msra.mxu0 0
          %448 = vmatpush.bf16.msra.mxu0 0
          %449 = vmatpush.bf16.msra.mxu0 %v436
          %450 = vmatmul.bf16.gmra.mxu0 %v440
          %v451 = vpop.f32.mrf.mxu0
          %v452 = vadd.f32 0.0, %v451
          %v453 = vpop.f32.mrf.mxu0
          %454 = vdwg.mxu0
          %v455 = vmul.f32 %v452, %v452
          %v456 = vld [vmem:[#allocation2] sm:$0x1]
          %v457 = vrot.slane %v452, 4
          %v458 = vadd.f32 %v452, %v457
          %v459 = vrot.slane %v458, 2
          %v460 = vadd.f32 %v458, %v459
          %v461 = vrot.slane %v460, 1
          %v462 = vadd.f32 %v460, %v461
          %v463 = vadd.f32 %v456, %v462
          %464 = vst [vmem:[#allocation2] sm:$0x1] %v463
          %v465 = vld [vmem:[#allocation2 + $0x3] sm:$0x1]
          %v466 = vrot.slane %v455, 4
          %v467 = vadd.f32 %v455, %v466
          %v468 = vrot.slane %v467, 2
          %v469 = vadd.f32 %v467, %v468
          %v470 = vrot.slane %v469, 1
          %v471 = vadd.f32 %v469, %v470
          %v472 = vadd.f32 %v465, %v471
          %473 = vst [vmem:[#allocation2 + $0x3] sm:$0x1] %v472
        $region80: #{tpu_custom_call.1} parent=47 // pred_fallthru
          _
        // Predicated region
        $region81: #{tpu_custom_call.1} parent=47 // pred_check
          %p474 = pneg %p335
        $region82: #{tpu_custom_call.1} parent=47 // pred_check_branch
          %476 = sbr.rel (%p474) target = $region84
        $region83: #{tpu_custom_call.1} parent=47 // pred_region
          %v477 = vpack.c.bf16 %v425, %v425
          %v478 = vld [vmem:[#allocation4] sm:$0xf]
          %v479 = vld [vmem:[#allocation4 + $0x4] sm:$0xf]
          %v482 = vunpack.c.l.b16 %v478
          %v483 = vunpack.c.l.b16 %v479
          %v484 = vpack.c.b16 %v483, %v482
          %vm486 = vcmask 130048
          %v488 = vsel %vm486, %v477, 0
          %490 = vmatpush.bf16.msra.mxu0 0
          %491 = vmatpush.bf16.msra.mxu0 0
          %492 = vmatpush.bf16.msra.mxu0 0
          %493 = vmatpush.bf16.msra.mxu0 0
          %494 = vmatpush.bf16.msra.mxu0 0
          %495 = vmatpush.bf16.msra.mxu0 0
          %496 = vmatpush.bf16.msra.mxu0 0
          %497 = vmatpush.bf16.msra.mxu0 %v484
          %498 = vmatmul.bf16.gmra.mxu0 %v488
          %v499 = vpop.f32.mrf.mxu0
          %v500 = vadd.f32 0.0, %v499
          %v501 = vpop.f32.mrf.mxu0
          %502 = vdwg.mxu0
          %v503 = vld [vmem:[#allocation3] sm:$0x1]
          %v504 = vperm.slane %v503, 0
          %v505 = vmul.f32 %v500, %v504
          %v506 = vld [vmem:[#allocation3 + $0x3] sm:$0x1]
          %v507 = vperm.slane %v506, 0
          %v508 = vadd.f32 %v505, %v507
          %vm509 = vcmp.gt.f32.partialorder %v508, 0.0
          %v510 = vmul.f32 %v508, 0.01
          %v511 = vsel %vm509, %v508, %v510
          %v512 = vpack.c.bf16 %v511, %v511
          %v513 = vld [vmem:[%s2] sm:$0xf]
          %v514 = vld [vmem:[%s2 + $0x4] sm:$0xf]
          %v515 = vld [vmem:[%s2 + $0x8] sm:$0xf]
          %v516 = vld [vmem:[%s2 + $0xc] sm:$0xf]
          %v517 = vld [vmem:[%s2 + $0x10] sm:$0xf]
          %v518 = vld [vmem:[%s2 + $0x14] sm:$0xf]
          %v519 = vld [vmem:[%s2 + $0x18] sm:$0xf]
          %v520 = vld [vmem:[%s2 + $0x1c] sm:$0xf]
          %v521 = vld [vmem:[%s2 + $0x20] sm:$0xf]
          %v522 = vld [vmem:[%s2 + $0x24] sm:$0xf]
          %v523 = vld [vmem:[%s2 + $0x28] sm:$0xf]
          %v524 = vld [vmem:[%s2 + $0x2c] sm:$0xf]
          %v525 = vld [vmem:[%s2 + $0x30] sm:$0xf]
          %v526 = vld [vmem:[%s2 + $0x34] sm:$0xf]
          %v527 = vld [vmem:[%s2 + $0x38] sm:$0xf]
          %v528 = vld [vmem:[%s2 + $0x3c] sm:$0xf]
          %v545 = vunpack.c.l.b16 %v513
          %v546 = vunpack.c.l.b16 %v514
          %v547 = vunpack.c.l.b16 %v515
          %v548 = vunpack.c.l.b16 %v516
          %v549 = vunpack.c.l.b16 %v517
          %v550 = vunpack.c.l.b16 %v518
          %v551 = vunpack.c.l.b16 %v519
          %v552 = vunpack.c.l.b16 %v520
          %v553 = vunpack.c.l.b16 %v521
          %v554 = vunpack.c.l.b16 %v522
          %v555 = vunpack.c.l.b16 %v523
          %v556 = vunpack.c.l.b16 %v524
          %v557 = vunpack.c.l.b16 %v525
          %v558 = vunpack.c.l.b16 %v526
          %v559 = vunpack.c.l.b16 %v527
          %v560 = vunpack.c.l.b16 %v528
          %v561 = vpack.c.b16 %v546, %v545
          %v562 = vpack.c.b16 %v548, %v547
          %v563 = vpack.c.b16 %v550, %v549
          %v564 = vpack.c.b16 %v552, %v551
          %v565 = vpack.c.b16 %v554, %v553
          %v566 = vpack.c.b16 %v556, %v555
          %v567 = vpack.c.b16 %v558, %v557
          %v568 = vpack.c.b16 %v560, %v559
          %577 = vmatpush.bf16.msra.mxu0 %v568
          %578 = vmatpush.bf16.msra.mxu0 %v567
          %579 = vmatpush.bf16.msra.mxu0 %v566
          %580 = vmatpush.bf16.msra.mxu0 %v565
          %581 = vmatpush.bf16.msra.mxu0 %v564
          %582 = vmatpush.bf16.msra.mxu0 %v563
          %583 = vmatpush.bf16.msra.mxu0 %v562
          %584 = vmatpush.bf16.msra.mxu0 %v561
          %585 = vmatmul.bf16.gmra.mxu0 %v512
          %v586 = vpop.f32.mrf.mxu0
          %v587 = vadd.f32 0.0, %v586
          %v588 = vpop.f32.mrf.mxu0
          %589 = vdwg.mxu0
          %v590 = vmul.f32 %v587, %v587
          %v591 = vld [vmem:[#allocation2 + $0x1] sm:$0x1]
          %v592 = vrot.slane %v587, 4
          %v593 = vadd.f32 %v587, %v592
          %v594 = vrot.slane %v593, 2
          %v595 = vadd.f32 %v593, %v594
          %v596 = vrot.slane %v595, 1
          %v597 = vadd.f32 %v595, %v596
          %v598 = vadd.f32 %v591, %v597
          %599 = vst [vmem:[#allocation2 + $0x1] sm:$0x1] %v598
          %v600 = vld [vmem:[#allocation2 + $0x4] sm:$0x1]
          %v601 = vrot.slane %v590, 4
          %v602 = vadd.f32 %v590, %v601
          %v603 = vrot.slane %v602, 2
          %v604 = vadd.f32 %v602, %v603
          %v605 = vrot.slane %v604, 1
          %v606 = vadd.f32 %v604, %v605
          %v607 = vadd.f32 %v600, %v606
          %608 = vst [vmem:[#allocation2 + $0x4] sm:$0x1] %v607
        $region84: #{tpu_custom_call.1} parent=47 // pred_fallthru
          _
        // Predicated region
        $region85: #{tpu_custom_call.1} parent=47 // pred_check
          %p609 = pneg %p365
        $region86: #{tpu_custom_call.1} parent=47 // pred_check_branch
          %611 = sbr.rel (%p609) target = $region88
        $region87: #{tpu_custom_call.1} parent=47 // pred_region
          %v612 = vpack.c.bf16 %v425, %v425
          %v613 = vld [vmem:[#allocation4] sm:$0xf]
          %v614 = vld [vmem:[#allocation4 + $0x4] sm:$0xf]
          %v617 = vunpack.c.l.b16 %v613
          %v618 = vunpack.c.l.b16 %v614
          %v619 = vpack.c.b16 %v618, %v617
          %vm621 = vcmask 130048
          %v623 = vsel %vm621, %v612, 0
          %625 = vmatpush.bf16.msra.mxu0 0
          %626 = vmatpush.bf16.msra.mxu0 0
          %627 = vmatpush.bf16.msra.mxu0 0
          %628 = vmatpush.bf16.msra.mxu0 0
          %629 = vmatpush.bf16.msra.mxu0 0
          %630 = vmatpush.bf16.msra.mxu0 0
          %631 = vmatpush.bf16.msra.mxu0 0
          %632 = vmatpush.bf16.msra.mxu0 %v619
          %633 = vmatmul.bf16.gmra.mxu0 %v623
          %v634 = vpop.f32.mrf.mxu0
          %v635 = vadd.f32 0.0, %v634
          %v636 = vpop.f32.mrf.mxu0
          %637 = vdwg.mxu0
          %v638 = vld [vmem:[#allocation3] sm:$0x1]
          %v639 = vperm.slane %v638, 0
          %v640 = vmul.f32 %v635, %v639
          %v641 = vld [vmem:[#allocation3 + $0x3] sm:$0x1]
          %v642 = vperm.slane %v641, 0
          %v643 = vadd.f32 %v640, %v642
          %vm644 = vcmp.gt.f32.partialorder %v643, 0.0
          %v645 = vmul.f32 %v643, 0.01
          %v646 = vsel %vm644, %v643, %v645
          %v647 = vpack.c.bf16 %v646, %v646
          %v648 = vld [vmem:[%s2] sm:$0xf]
          %v649 = vld [vmem:[%s2 + $0x4] sm:$0xf]
          %v650 = vld [vmem:[%s2 + $0x8] sm:$0xf]
          %v651 = vld [vmem:[%s2 + $0xc] sm:$0xf]
          %v652 = vld [vmem:[%s2 + $0x10] sm:$0xf]
          %v653 = vld [vmem:[%s2 + $0x14] sm:$0xf]
          %v654 = vld [vmem:[%s2 + $0x18] sm:$0xf]
          %v655 = vld [vmem:[%s2 + $0x1c] sm:$0xf]
          %v656 = vld [vmem:[%s2 + $0x20] sm:$0xf]
          %v657 = vld [vmem:[%s2 + $0x24] sm:$0xf]
          %v658 = vld [vmem:[%s2 + $0x28] sm:$0xf]
          %v659 = vld [vmem:[%s2 + $0x2c] sm:$0xf]
          %v660 = vld [vmem:[%s2 + $0x30] sm:$0xf]
          %v661 = vld [vmem:[%s2 + $0x34] sm:$0xf]
          %v662 = vld [vmem:[%s2 + $0x38] sm:$0xf]
          %v663 = vld [vmem:[%s2 + $0x3c] sm:$0xf]
          %v680 = vunpack.c.l.b16 %v648
          %v681 = vunpack.c.l.b16 %v649
          %v682 = vunpack.c.l.b16 %v650
          %v683 = vunpack.c.l.b16 %v651
          %v684 = vunpack.c.l.b16 %v652
          %v685 = vunpack.c.l.b16 %v653
          %v686 = vunpack.c.l.b16 %v654
          %v687 = vunpack.c.l.b16 %v655
          %v688 = vunpack.c.l.b16 %v656
          %v689 = vunpack.c.l.b16 %v657
          %v690 = vunpack.c.l.b16 %v658
          %v691 = vunpack.c.l.b16 %v659
          %v692 = vunpack.c.l.b16 %v660
          %v693 = vunpack.c.l.b16 %v661
          %v694 = vunpack.c.l.b16 %v662
          %v695 = vunpack.c.l.b16 %v663
          %v696 = vpack.c.b16 %v681, %v680
          %v697 = vpack.c.b16 %v683, %v682
          %v698 = vpack.c.b16 %v685, %v684
          %v699 = vpack.c.b16 %v687, %v686
          %v700 = vpack.c.b16 %v689, %v688
          %v701 = vpack.c.b16 %v691, %v690
          %v702 = vpack.c.b16 %v693, %v692
          %v703 = vpack.c.b16 %v695, %v694
          %712 = vmatpush.bf16.msra.mxu0 %v703
          %713 = vmatpush.bf16.msra.mxu0 %v702
          %714 = vmatpush.bf16.msra.mxu0 %v701
          %715 = vmatpush.bf16.msra.mxu0 %v700
          %716 = vmatpush.bf16.msra.mxu0 %v699
          %717 = vmatpush.bf16.msra.mxu0 %v698
          %718 = vmatpush.bf16.msra.mxu0 %v697
          %719 = vmatpush.bf16.msra.mxu0 %v696
          %720 = vmatmul.bf16.gmra.mxu0 %v647
          %v721 = vpop.f32.mrf.mxu0
          %v722 = vadd.f32 0.0, %v721
          %v723 = vpop.f32.mrf.mxu0
          %724 = vdwg.mxu0
          %v725 = vld [vmem:[#allocation3 + $0x1] sm:$0x1]
          %v726 = vperm.slane %v725, 0
          %v727 = vmul.f32 %v722, %v726
          %v728 = vld [vmem:[#allocation3 + $0x4] sm:$0x1]
          %v729 = vperm.slane %v728, 0
          %v730 = vadd.f32 %v727, %v729
          %vm731 = vcmp.gt.f32.partialorder %v730, 0.0
          %v732 = vmul.f32 %v730, 0.01
          %v733 = vsel %vm731, %v730, %v732
          %v734 = vpack.c.bf16 %v733, %v733
          %v735 = vld [vmem:[#allocation7] sm:$0xf]
          %v736 = vld [vmem:[#allocation7 + $0x4] sm:$0xf]
          %v737 = vld [vmem:[#allocation7 + $0x8] sm:$0xf]
          %v738 = vld [vmem:[#allocation7 + $0xc] sm:$0xf]
          %v739 = vld [vmem:[#allocation7 + $0x10] sm:$0xf]
          %v740 = vld [vmem:[#allocation7 + $0x14] sm:$0xf]
          %v741 = vld [vmem:[#allocation7 + $0x18] sm:$0xf]
          %v742 = vld [vmem:[#allocation7 + $0x1c] sm:$0xf]
          %v743 = vld [vmem:[#allocation7 + $0x20] sm:$0xf]
          %v744 = vld [vmem:[#allocation7 + $0x24] sm:$0xf]
          %v745 = vld [vmem:[#allocation7 + $0x28] sm:$0xf]
          %v746 = vld [vmem:[#allocation7 + $0x2c] sm:$0xf]
          %v747 = vld [vmem:[#allocation7 + $0x30] sm:$0xf]
          %v748 = vld [vmem:[#allocation7 + $0x34] sm:$0xf]
          %v749 = vld [vmem:[#allocation7 + $0x38] sm:$0xf]
          %v750 = vld [vmem:[#allocation7 + $0x3c] sm:$0xf]
          %v767 = vunpack.c.l.b16 %v735
          %v768 = vunpack.c.l.b16 %v736
          %v769 = vunpack.c.l.b16 %v737
          %v770 = vunpack.c.l.b16 %v738
          %v771 = vunpack.c.l.b16 %v739
          %v772 = vunpack.c.l.b16 %v740
          %v773 = vunpack.c.l.b16 %v741
          %v774 = vunpack.c.l.b16 %v742
          %v775 = vunpack.c.l.b16 %v743
          %v776 = vunpack.c.l.b16 %v744
          %v777 = vunpack.c.l.b16 %v745
          %v778 = vunpack.c.l.b16 %v746
          %v779 = vunpack.c.l.b16 %v747
          %v780 = vunpack.c.l.b16 %v748
          %v781 = vunpack.c.l.b16 %v749
          %v782 = vunpack.c.l.b16 %v750
          %v783 = vpack.c.b16 %v768, %v767
          %v784 = vpack.c.b16 %v770, %v769
          %v785 = vpack.c.b16 %v772, %v771
          %v786 = vpack.c.b16 %v774, %v773
          %v787 = vpack.c.b16 %v776, %v775
          %v788 = vpack.c.b16 %v778, %v777
          %v789 = vpack.c.b16 %v780, %v779
          %v790 = vpack.c.b16 %v782, %v781
          %799 = vmatpush.bf16.msra.mxu0 %v790
          %800 = vmatpush.bf16.msra.mxu0 %v789
          %801 = vmatpush.bf16.msra.mxu0 %v788
          %802 = vmatpush.bf16.msra.mxu0 %v787
          %803 = vmatpush.bf16.msra.mxu0 %v786
          %804 = vmatpush.bf16.msra.mxu0 %v785
          %805 = vmatpush.bf16.msra.mxu0 %v784
          %806 = vmatpush.bf16.msra.mxu0 %v783
          %807 = vmatmul.bf16.gmra.mxu0 %v734
          %v808 = vpop.f32.mrf.mxu0
          %v809 = vadd.f32 0.0, %v808
          %v810 = vpop.f32.mrf.mxu0
          %811 = vdwg.mxu0
          %v812 = vmul.f32 %v809, %v809
          %v813 = vld [vmem:[#allocation2 + $0x2] sm:$0x1]
          %v814 = vrot.slane %v809, 4
          %v815 = vadd.f32 %v809, %v814
          %v816 = vrot.slane %v815, 2
          %v817 = vadd.f32 %v815, %v816
          %v818 = vrot.slane %v817, 1
          %v819 = vadd.f32 %v817, %v818
          %v820 = vadd.f32 %v813, %v819
          %821 = vst [vmem:[#allocation2 + $0x2] sm:$0x1] %v820
          %v822 = vld [vmem:[#allocation2 + $0x5] sm:$0x1]
          %v823 = vrot.slane %v812, 4
          %v824 = vadd.f32 %v812, %v823
          %v825 = vrot.slane %v824, 2
          %v826 = vadd.f32 %v824, %v825
          %v827 = vrot.slane %v826, 1
          %v828 = vadd.f32 %v826, %v827
          %v829 = vadd.f32 %v822, %v828
          %830 = vst [vmem:[#allocation2 + $0x5] sm:$0x1] %v829
        $region88: #{tpu_custom_call.1} parent=47 // pred_fallthru
          _
        // Predicated region
        $region89: #{tpu_custom_call.1} parent=47 // pred_check
          %p831 = pneg %p395
        $region90: #{tpu_custom_call.1} parent=47 // pred_check_branch
          %833 = sbr.rel (%p831) target = $region92
        $region91: #{tpu_custom_call.1} parent=47 // pred_region
          %v834 = vpack.c.bf16 %v425, %v425
          %v835 = vld [vmem:[#allocation4] sm:$0xf]
          %v836 = vld [vmem:[#allocation4 + $0x4] sm:$0xf]
          %v839 = vunpack.c.l.b16 %v835
          %v840 = vunpack.c.l.b16 %v836
          %v841 = vpack.c.b16 %v840, %v839
          %vm843 = vcmask 130048
          %v845 = vsel %vm843, %v834, 0
          %847 = vmatpush.bf16.msra.mxu0 0
          %848 = vmatpush.bf16.msra.mxu0 0
          %849 = vmatpush.bf16.msra.mxu0 0
          %850 = vmatpush.bf16.msra.mxu0 0
          %851 = vmatpush.bf16.msra.mxu0 0
          %852 = vmatpush.bf16.msra.mxu0 0
          %853 = vmatpush.bf16.msra.mxu0 0
          %854 = vmatpush.bf16.msra.mxu0 %v841
          %855 = vmatmul.bf16.gmra.mxu0 %v845
          %v856 = vpop.f32.mrf.mxu0
          %v857 = vadd.f32 0.0, %v856
          %v858 = vpop.f32.mrf.mxu0
          %859 = vdwg.mxu0
          %v860 = vld [vmem:[#allocation3] sm:$0x1]
          %v861 = vperm.slane %v860, 0
          %v862 = vmul.f32 %v857, %v861
          %v863 = vld [vmem:[#allocation3 + $0x3] sm:$0x1]
          %v864 = vperm.slane %v863, 0
          %v865 = vadd.f32 %v862, %v864
          %vm866 = vcmp.gt.f32.partialorder %v865, 0.0
          %v867 = vmul.f32 %v865, 0.01
          %v868 = vsel %vm866, %v865, %v867
          %v869 = vpack.c.bf16 %v868, %v868
          %v870 = vld [vmem:[%s2] sm:$0xf]
          %v871 = vld [vmem:[%s2 + $0x4] sm:$0xf]
          %v872 = vld [vmem:[%s2 + $0x8] sm:$0xf]
          %v873 = vld [vmem:[%s2 + $0xc] sm:$0xf]
          %v874 = vld [vmem:[%s2 + $0x10] sm:$0xf]
          %v875 = vld [vmem:[%s2 + $0x14] sm:$0xf]
          %v876 = vld [vmem:[%s2 + $0x18] sm:$0xf]
          %v877 = vld [vmem:[%s2 + $0x1c] sm:$0xf]
          %v878 = vld [vmem:[%s2 + $0x20] sm:$0xf]
          %v879 = vld [vmem:[%s2 + $0x24] sm:$0xf]
          %v880 = vld [vmem:[%s2 + $0x28] sm:$0xf]
          %v881 = vld [vmem:[%s2 + $0x2c] sm:$0xf]
          %v882 = vld [vmem:[%s2 + $0x30] sm:$0xf]
          %v883 = vld [vmem:[%s2 + $0x34] sm:$0xf]
          %v884 = vld [vmem:[%s2 + $0x38] sm:$0xf]
          %v885 = vld [vmem:[%s2 + $0x3c] sm:$0xf]
          %v902 = vunpack.c.l.b16 %v870
          %v903 = vunpack.c.l.b16 %v871
          %v904 = vunpack.c.l.b16 %v872
          %v905 = vunpack.c.l.b16 %v873
          %v906 = vunpack.c.l.b16 %v874
          %v907 = vunpack.c.l.b16 %v875
          %v908 = vunpack.c.l.b16 %v876
          %v909 = vunpack.c.l.b16 %v877
          %v910 = vunpack.c.l.b16 %v878
          %v911 = vunpack.c.l.b16 %v879
          %v912 = vunpack.c.l.b16 %v880
          %v913 = vunpack.c.l.b16 %v881
          %v914 = vunpack.c.l.b16 %v882
          %v915 = vunpack.c.l.b16 %v883
          %v916 = vunpack.c.l.b16 %v884
          %v917 = vunpack.c.l.b16 %v885
          %v918 = vpack.c.b16 %v903, %v902
          %v919 = vpack.c.b16 %v905, %v904
          %v920 = vpack.c.b16 %v907, %v906
          %v921 = vpack.c.b16 %v909, %v908
          %v922 = vpack.c.b16 %v911, %v910
          %v923 = vpack.c.b16 %v913, %v912
          %v924 = vpack.c.b16 %v915, %v914
          %v925 = vpack.c.b16 %v917, %v916
          %934 = vmatpush.bf16.msra.mxu0 %v925
          %935 = vmatpush.bf16.msra.mxu0 %v924
          %936 = vmatpush.bf16.msra.mxu0 %v923
          %937 = vmatpush.bf16.msra.mxu0 %v922
          %938 = vmatpush.bf16.msra.mxu0 %v921
          %939 = vmatpush.bf16.msra.mxu0 %v920
          %940 = vmatpush.bf16.msra.mxu0 %v919
          %941 = vmatpush.bf16.msra.mxu0 %v918
          %942 = vmatmul.bf16.gmra.mxu0 %v869
          %v943 = vpop.f32.mrf.mxu0
          %v944 = vadd.f32 0.0, %v943
          %v945 = vpop.f32.mrf.mxu0
          %946 = vdwg.mxu0
          %v947 = vld [vmem:[#allocation3 + $0x1] sm:$0x1]
          %v948 = vperm.slane %v947, 0
          %v949 = vmul.f32 %v944, %v948
          %v950 = vld [vmem:[#allocation3 + $0x4] sm:$0x1]
          %v951 = vperm.slane %v950, 0
          %v952 = vadd.f32 %v949, %v951
          %vm953 = vcmp.gt.f32.partialorder %v952, 0.0
          %v954 = vmul.f32 %v952, 0.01
          %v955 = vsel %vm953, %v952, %v954
          %v956 = vpack.c.bf16 %v955, %v955
          %v957 = vld [vmem:[#allocation7] sm:$0xf]
          %v958 = vld [vmem:[#allocation7 + $0x4] sm:$0xf]
          %v959 = vld [vmem:[#allocation7 + $0x8] sm:$0xf]
          %v960 = vld [vmem:[#allocation7 + $0xc] sm:$0xf]
          %v961 = vld [vmem:[#allocation7 + $0x10] sm:$0xf]
          %v962 = vld [vmem:[#allocation7 + $0x14] sm:$0xf]
          %v963 = vld [vmem:[#allocation7 + $0x18] sm:$0xf]
          %v964 = vld [vmem:[#allocation7 + $0x1c] sm:$0xf]
          %v965 = vld [vmem:[#allocation7 + $0x20] sm:$0xf]
          %v966 = vld [vmem:[#allocation7 + $0x24] sm:$0xf]
          %v967 = vld [vmem:[#allocation7 + $0x28] sm:$0xf]
          %v968 = vld [vmem:[#allocation7 + $0x2c] sm:$0xf]
          %v969 = vld [vmem:[#allocation7 + $0x30] sm:$0xf]
          %v970 = vld [vmem:[#allocation7 + $0x34] sm:$0xf]
          %v971 = vld [vmem:[#allocation7 + $0x38] sm:$0xf]
          %v972 = vld [vmem:[#allocation7 + $0x3c] sm:$0xf]
          %v989 = vunpack.c.l.b16 %v957
          %v990 = vunpack.c.l.b16 %v958
          %v991 = vunpack.c.l.b16 %v959
          %v992 = vunpack.c.l.b16 %v960
          %v993 = vunpack.c.l.b16 %v961
          %v994 = vunpack.c.l.b16 %v962
          %v995 = vunpack.c.l.b16 %v963
          %v996 = vunpack.c.l.b16 %v964
          %v997 = vunpack.c.l.b16 %v965
          %v998 = vunpack.c.l.b16 %v966
          %v999 = vunpack.c.l.b16 %v967
          %v1000 = vunpack.c.l.b16 %v968
          %v1001 = vunpack.c.l.b16 %v969
          %v1002 = vunpack.c.l.b16 %v970
          %v1003 = vunpack.c.l.b16 %v971
          %v1004 = vunpack.c.l.b16 %v972
          %v1005 = vpack.c.b16 %v990, %v989
          %v1006 = vpack.c.b16 %v992, %v991
          %v1007 = vpack.c.b16 %v994, %v993
          %v1008 = vpack.c.b16 %v996, %v995
          %v1009 = vpack.c.b16 %v998, %v997
          %v1010 = vpack.c.b16 %v1000, %v999
          %v1011 = vpack.c.b16 %v1002, %v1001
          %v1012 = vpack.c.b16 %v1004, %v1003
          %1021 = vmatpush.bf16.msra.mxu0 %v1012
          %1022 = vmatpush.bf16.msra.mxu0 %v1011
          %1023 = vmatpush.bf16.msra.mxu0 %v1010
          %1024 = vmatpush.bf16.msra.mxu0 %v1009
          %1025 = vmatpush.bf16.msra.mxu0 %v1008
          %1026 = vmatpush.bf16.msra.mxu0 %v1007
          %1027 = vmatpush.bf16.msra.mxu0 %v1006
          %1028 = vmatpush.bf16.msra.mxu0 %v1005
          %1029 = vmatmul.bf16.gmra.mxu0 %v956
          %v1030 = vpop.f32.mrf.mxu0
          %v1031 = vadd.f32 0.0, %v1030
          %v1032 = vpop.f32.mrf.mxu0
          %1033 = vdwg.mxu0
          %v1034 = vld [vmem:[#allocation3 + $0x2] sm:$0x1]
          %v1035 = vperm.slane %v1034, 0
          %v1036 = vmul.f32 %v1031, %v1035
          %v1037 = vld [vmem:[#allocation3 + $0x5] sm:$0x1]
          %v1038 = vperm.slane %v1037, 0
          %v1039 = vadd.f32 %v1036, %v1038
          %vm1040 = vcmp.gt.f32.partialorder %v1039, 0.0
          %v1041 = vmul.f32 %v1039, 0.01
          %v1042 = vsel %vm1040, %v1039, %v1041
          %v1043 = vpack.c.bf16 %v1042, %v1042
          %v1044 = vld [vmem:[%s4] sm:$0xf]
          %v1045 = vld [vmem:[%s4 + $0x4] sm:$0xf]
          %v1046 = vld [vmem:[%s4 + $0x8] sm:$0xf]
          %v1047 = vld [vmem:[%s4 + $0xc] sm:$0xf]
          %v1048 = vld [vmem:[%s4 + $0x10] sm:$0xf]
          %v1049 = vld [vmem:[%s4 + $0x14] sm:$0xf]
          %v1050 = vld [vmem:[%s4 + $0x18] sm:$0xf]
          %v1051 = vld [vmem:[%s4 + $0x1c] sm:$0xf]
          %v1052 = vld [vmem:[%s4 + $0x20] sm:$0xf]
          %v1053 = vld [vmem:[%s4 + $0x24] sm:$0xf]
          %v1054 = vld [vmem:[%s4 + $0x28] sm:$0xf]
          %v1055 = vld [vmem:[%s4 + $0x2c] sm:$0xf]
          %v1056 = vld [vmem:[%s4 + $0x30] sm:$0xf]
          %v1057 = vld [vmem:[%s4 + $0x34] sm:$0xf]
          %v1058 = vld [vmem:[%s4 + $0x38] sm:$0xf]
          %v1059 = vld [vmem:[%s4 + $0x3c] sm:$0xf]
          %v1060 = vld [vmem:[%s6] sm:$0x1]
          %v1062 = vperm.slane %v1060, 0
          %v1080 = vunpack.c.l.b16 %v1044
          %v1081 = vunpack.c.l.b16 %v1045
          %v1082 = vunpack.c.l.b16 %v1046
          %v1083 = vunpack.c.l.b16 %v1047
          %v1084 = vunpack.c.l.b16 %v1048
          %v1085 = vunpack.c.l.b16 %v1049
          %v1086 = vunpack.c.l.b16 %v1050
          %v1087 = vunpack.c.l.b16 %v1051
          %v1088 = vunpack.c.l.b16 %v1052
          %v1089 = vunpack.c.l.b16 %v1053
          %v1090 = vunpack.c.l.b16 %v1054
          %v1091 = vunpack.c.l.b16 %v1055
          %v1092 = vunpack.c.l.b16 %v1056
          %v1093 = vunpack.c.l.b16 %v1057
          %v1094 = vunpack.c.l.b16 %v1058
          %v1095 = vunpack.c.l.b16 %v1059
          %v1096 = vpack.c.b16 %v1081, %v1080
          %v1097 = vpack.c.b16 %v1083, %v1082
          %v1098 = vpack.c.b16 %v1085, %v1084
          %v1099 = vpack.c.b16 %v1087, %v1086
          %v1100 = vpack.c.b16 %v1089, %v1088
          %v1101 = vpack.c.b16 %v1091, %v1090
          %v1102 = vpack.c.b16 %v1093, %v1092
          %v1103 = vpack.c.b16 %v1095, %v1094
          %1112 = vmatpush.bf16.msra.mxu0 %v1103
          %1113 = vmatpush.bf16.msra.mxu0 %v1102
          %1114 = vmatpush.bf16.msra.mxu0 %v1101
          %1115 = vmatpush.bf16.msra.mxu0 %v1100
          %1116 = vmatpush.bf16.msra.mxu0 %v1099
          %1117 = vmatpush.bf16.msra.mxu0 %v1098
          %1118 = vmatpush.bf16.msra.mxu0 %v1097
          %1119 = vmatpush.bf16.msra.mxu0 %v1096
          %1120 = vmatmul.bf16.gmra.mxu0 %v1043
          %v1121 = vpop.f32.mrf.mxu0
          %v1122 = vadd.f32 %v1062, %v1121
          %v1123 = vpop.f32.mrf.mxu0
          %1124 = vdwg.mxu0
          %vm1125 = vcmask 80896
          %1126 = vst.msk [vmem:[#allocation10] sm:$0xff] %vm1125, %v1122
        $region92: #{tpu_custom_call.1} parent=47 // pred_fallthru
          _
        // Predicated region
        $region93: #{tpu_custom_call.1} parent=47 // pred_check
          %p1127 = pneg %p203
        $region94: #{tpu_custom_call.1} parent=47 // pred_check_branch
          %1129 = sbr.rel (%p1127) target = $region96
        $region95: #{tpu_custom_call.1} parent=47 // pred_region
          %1131 = vsyncadd [#allocation6], 0
          %s1132 = smul.addr %s26, 8
          %s1133 = scalar_lea.hbm %s7, %s1132
          %s1135 = sshll.u32 [#allocation10], 4
          %s1136 = int_to_ptr.vmem [resolvable:$true] %s1135
          %s1137 = sshll.u32 %s1133, 4
          %s1138 = int_to_ptr.hbm [resolvable:$true] %s1137
          %1140 = dma.vmem_to_hbm [thread:$0]  %s1136, 128, %s1138, [#allocation6]
        $region96: #{tpu_custom_call.1} parent=47 // pred_fallthru
          _
        // Predicated region
        $region97: #{tpu_custom_call.1} parent=47 // pred_check
          %p1141 = pneg %p203
        $region98: #{tpu_custom_call.1} parent=47 // pred_check_branch
          %1143 = sbr.rel (%p1141) target = $region100
        $region99: #{tpu_custom_call.1} parent=47 // pred_region
          %1145 = dma.done [#allocation6], 128
        $region100: #{tpu_custom_call.1} parent=47 // pred_fallthru
          _
      $region48: #{tpu_custom_call.1} parent=5 // pred_fallthru
        _
      %p1146 = scmp.le.s32.totalorder 2, %s16
      // Predicated region
      $region101: #{tpu_custom_call.1} parent=5 // pred_check
        %p1147 = pneg %p1146
      $region102: #{tpu_custom_call.1} parent=5 // pred_check_branch
        %1149 = sbr.rel (%p1147) target = $region104
      $region103: #{tpu_custom_call.1} parent=5 // pred_region
        %s1150 = ssub.s32 %s16, 2
      $region104: #{tpu_custom_call.1} parent=5 // pred_fallthru
        _
    $region6: #{tpu_custom_call.1} parent=1 // loop_footer
      %s20 = sadd.s32 1, %s16
    $region7: #{tpu_custom_call.1} parent=1 // loop_footer_branch
      %15 = sbr.rel target = $region3
    $region8: #{tpu_custom_call.1} parent=1 // loop_exit
      _
    %1151 = vsyncpa [#allocation5], 1
    %s1152 = scalar_lea.sflag [#allocation5], 1
    %1153 = vsyncpa %s1152, 1
    %1154 = vsyncpa [#allocation8], 1
    %1155 = vsyncpa [#allocation6], 1
    %s1156 = scalar_lea.sflag [#allocation6], 1
    %1157 = vsyncpa %s1156, 1

</llo_original>
